<compile_context>
chip_gen: v7x
topology: tpu7x:2x2x1
jax: 0.10.0
libtpu: 0.0.40
codegen_flags: <defaults>
</compile_context>

<pallas_src>
import functools

import jax
import jax.numpy as jnp
from jax import lax
from jax.experimental import pallas as pl
from jax.experimental.pallas import tpu as pltpu

_NEG_LARGE = -1e30  # finite "-inf": fully masked rows give uniform weights, not NaN


def _mha_kernel(*refs, num_heads, head_dim, has_mask):
    """One grid step == (batch element b, query tile t).

    Refs (in order):
      [mask_ref]: (tq, S) int8, nonzero => masked   (only when has_mask)
      q_ref:      (1, tq, D) bf16
      k_ref:      (1, S,  D) bf16
      v_ref:      (1, S,  D) bf16
      w*_ref:     (D, D)     bf16, pre-transposed to [in, out]; Wq also carries
                  the 1/sqrt(head_dim) scale
      o_ref:      (1, tq, D) output dtype
      kp_ref:     (S, D) bf16 VMEM scratch  (cached K projection, per batch)
      vp_ref:     (S, D) bf16 VMEM scratch  (cached V projection, per batch)
    """
    if has_mask:
        (mask_ref, q_ref, k_ref, v_ref,
         wq_ref, wk_ref, wv_ref, wo_ref,
         o_ref, kp_ref, vp_ref) = refs
    else:
        (q_ref, k_ref, v_ref,
         wq_ref, wk_ref, wv_ref, wo_ref,
         o_ref, kp_ref, vp_ref) = refs

    t = pl.program_id(1)

    # K/V projections computed ONCE per batch element (first query tile) and
    # cached in bf16 scratch across the "arbitrary" query-tile axis.
    @pl.when(t == 0)
    def _():
        kp_ref[...] = jnp.dot(k_ref[0], wk_ref[...],
                              preferred_element_type=jnp.float32).astype(jnp.bfloat16)
        vp_ref[...] = jnp.dot(v_ref[0], wv_ref[...],
                              preferred_element_type=jnp.float32).astype(jnp.bfloat16)

    # Q projection for this tile only (each query row projected exactly once).
    # Scale is pre-folded into wq_ref, so no per-score multiply below.
    qp = jnp.dot(q_ref[0], wq_ref[...],
                 preferred_element_type=jnp.float32).astype(jnp.bfloat16)   # (tq, D)
    kp = kp_ref[...]                       # (S, D) bf16
    vp = vp_ref[...]                       # (S, D) bf16
    wo = wo_ref[...]                       # (D, D) bf16 (W_o^T)

    if has_mask:
        # Additive finite "-inf" bias, computed once per tile and hoisted out
        # of the head loop.  Wrapper guarantees a 0/1 int8 mask.
        bias = mask_ref[...].astype(jnp.float32) * _NEG_LARGE               # (tq, S)

    tq = qp.shape[0]
    d_model = wo.shape[1]
    acc = jnp.zeros((tq, d_model), jnp.float32)

    # TODO(synk): for num_heads >= 16 switch this static unroll to a
    # lax.fori_loop / head grid axis to bound live ranges and program size.
    for h in range(num_heads):
        lo = h * head_dim
        qh = qp[:, lo:lo + head_dim]       # (tq, hd) bf16
        kh = kp[:, lo:lo + head_dim]       # (S, hd)  bf16
        vh = vp[:, lo:lo + head_dim]       # (S, hd)  bf16

        # Q K^T: contract the last dim of both operands (no kh.T materialized).
        s = lax.dot_general(qh, kh, (((1,), (1,)), ((), ())),
                            preferred_element_type=jnp.float32)             # (tq, S)
        if has_mask:
            s = s + bias

        # Explicit softmax: max-subtract, exp (EUP), approx reciprocal (EUP).
        s = s - jnp.max(s, axis=-1, keepdims=True)
        p = jnp.exp(s)
        p = p * pl.reciprocal(jnp.sum(p, axis=-1, keepdims=True), approx=True)
        # TODO(synk): attn_dropout / output_dropout have p == 0.0 -> identity;
        # nonzero dropout would need pltpu.prng_seed / prng_random_bits masks.

        head_out = jnp.dot(p.astype(jnp.bfloat16), vh,
                           preferred_element_type=jnp.float32)              # (tq, hd)

        # Fused output projection: this head's slab of W_o^T accumulated as a
        # VALUE (no per-head VMEM read-modify-write), stored once at the end.
        acc = acc + jnp.dot(head_out.astype(jnp.bfloat16),
                            wo[lo:lo + head_dim, :],
                            preferred_element_type=jnp.float32)

    o_ref[0] = acc.astype(o_ref.dtype)


def _vmem_limit_bytes():
    """~3/4 of the chip's physical VMEM (v7x ~48 MiB, v5e/v6e ~96 MiB)."""
    try:
        cap = pltpu.get_tpu_info().vmem_capacity_bytes
        return min((cap * 3) // 4, 100 * 1024 * 1024)
    except Exception:
        return 64 * 1024 * 1024


def multi_head_attention(q, k, v, wq, wk, wv, wo, num_heads, attn_mask=None, *, tq=None):
    """Forward pass of MultiHeadAttention.

    q: (B, T, D); k, v: (B, S, D); wq/wk/wv/wo: (D, D) in PyTorch [out, in]
    layout; attn_mask: (T, S), nonzero == masked.  Returns (B, T, D) in q.dtype.
    """
    B, T, D = q.shape
    _, S, _ = k.shape
    assert D % num_heads == 0, "d_model must be divisible by num_heads"
    head_dim = D // num_heads

    # Query tiling: one block for short sequences, 128-row tiles otherwise.
    if tq is None:
        tq = T if T <= 128 else 128
    assert T % tq == 0, "target_len must be a multiple of the query tile size"

    has_mask = attn_mask is not None

    bf = jnp.bfloat16
    # Pre-transpose once in the wrapper (kernel sees [in, out]), fold the
    # 1/sqrt(head_dim) scale into Wq, and ship bf16 MXU operands; accumulation
    # stays f32 in-kernel.
    scale = head_dim ** (-0.5)
    wq_t = (wq.T * scale).astype(bf)
    wk_t = wk.T.astype(bf)
    wv_t = wv.T.astype(bf)
    wo_t = wo.T.astype(bf)
    q_bf = q.astype(bf)
    k_bf = k.astype(bf)
    v_bf = v.astype(bf)

    kernel = functools.partial(_mha_kernel, num_heads=num_heads,
                               head_dim=head_dim, has_mask=has_mask)

    in_specs = []
    args = []
    if has_mask:
        mask = (attn_mask != 0).astype(jnp.int8)                 # 1 byte/elem
        in_specs.append(pl.BlockSpec((tq, S), lambda b, t: (t, 0)))
        args.append(mask)
    in_specs += [
        pl.BlockSpec((1, tq, D), lambda b, t: (b, t, 0)),        # q (bf16)
        pl.BlockSpec((1, S, D), lambda b, t: (b, 0, 0)),         # k (bf16)
        pl.BlockSpec((1, S, D), lambda b, t: (b, 0, 0)),         # v (bf16)
        pl.BlockSpec((D, D), lambda b, t: (0, 0)),               # Wq^T * scale
        pl.BlockSpec((D, D), lambda b, t: (0, 0)),               # Wk^T
        pl.BlockSpec((D, D), lambda b, t: (0, 0)),               # Wv^T
        pl.BlockSpec((D, D), lambda b, t: (0, 0)),               # Wo^T
    ]
    args += [q_bf, k_bf, v_bf, wq_t, wk_t, wv_t, wo_t]

    return pl.pallas_call(
        kernel,
        out_shape=jax.ShapeDtypeStruct((B, T, D), q.dtype),
        grid_spec=pltpu.PrefetchScalarGridSpec(
            num_scalar_prefetch=0,
            grid=(B, T // tq),
            in_specs=in_specs,
            out_specs=pl.BlockSpec((1, tq, D), lambda b, t: (b, t, 0)),
            scratch_shapes=[pltpu.VMEM((S, D), bf),              # cached K proj
                            pltpu.VMEM((S, D), bf)],             # cached V proj
        ),
        compiler_params=pltpu.CompilerParams(
            # t axis carries the kp/vp cache -> "arbitrary"; batch is parallel
            # (megacore-friendly).
            dimension_semantics=("parallel", "arbitrary"),
            vmem_limit_bytes=_vmem_limit_bytes(),
        ),
    )(*args)


def _reference(q, k, v, wq, wk, wv, wo, num_heads, attn_mask=None):
    """Pure-JAX f32 reference mirroring the PyTorch forward."""
    B, T, D = q.shape
    _, S, _ = k.shape
    hd = D // num_heads
    qp = (q @ wq.T).reshape(B, T, num_heads, hd).transpose(0, 2, 1, 3)
    kp = (k @ wk.T).reshape(B, S, num_heads, hd).transpose(0, 2, 1, 3)
    vp = (v @ wv.T).reshape(B, S, num_heads, hd).transpose(0, 2, 1, 3)
    qp = qp * hd ** (-0.5)
    attn = jnp.einsum('bhtd,bhsd->bhts', qp, kp)
    if attn_mask is not None:
        attn = jnp.where(attn_mask[None, None], -jnp.inf, attn)
    attn = jax.nn.softmax(attn, axis=-1)
    out = jnp.einsum('bhts,bhsd->bhtd', attn, vp)
    out = out.transpose(0, 2, 1, 3).reshape(B, T, D)
    return out @ wo.T


if __name__ == "__main__":
    B, T, S = 2, 8, 8
    d_model, num_heads = 32, 4

    key = jax.random.PRNGKey(0)
    kq, kk, kv, kwq, kwk, kwv, kwo = jax.random.split(key, 7)

    q = jax.random.normal(kq, (B, T, d_model), jnp.float32)
    k = jax.random.normal(kk, (B, S, d_model), jnp.float32)
    v = jax.random.normal(kv, (B, S, d_model), jnp.float32)

    # Deterministic "linear(..., bias=False)" weights, PyTorch [out, in] layout.
    w_scale = 1.0 / (d_model ** 0.5)
    wq = jax.random.normal(kwq, (d_model, d_model), jnp.float32) * w_scale
    wk = jax.random.normal(kwk, (d_model, d_model), jnp.float32) * w_scale
    wv = jax.random.normal(kwv, (d_model, d_model), jnp.float32) * w_scale
    wo = jax.random.normal(kwo, (d_model, d_model), jnp.float32) * w_scale

    # Causal mask (nonzero == masked), like attn_mask in the module.
    attn_mask = jnp.triu(jnp.ones((T, S), jnp.int32), k=1)

    # Masked path.
    out = multi_head_attention(q, k, v, wq, wk, wv, wo, num_heads,
                               attn_mask=attn_mask)
    out = jax.block_until_ready(out)
    ref = _reference(q, k, v, wq, wk, wv, wo, num_heads,
                     attn_mask=attn_mask.astype(bool))
    assert out.shape == (B, T, d_model)
    # Kernel feeds the MXU bf16 operands -> bf16-appropriate tolerance.
    assert jnp.allclose(out, ref, atol=5e-2, rtol=5e-2), "masked mismatch vs reference"

    # Unmasked path (mask input / bias add compiled out).
    out_nm = multi_head_attention(q, k, v, wq, wk, wv, wo, num_heads)
    out_nm = jax.block_until_ready(out_nm)
    ref_nm = _reference(q, k, v, wq, wk, wv, wo, num_heads)
    assert jnp.allclose(out_nm, ref_nm, atol=5e-2, rtol=5e-2), "unmasked mismatch vs reference"

    print("KERNEL_OK")
</pallas_src>

<mosaic_0001>
module attributes {stable_mosaic.version = 11 : i64} {
  func.func @_mha_kernel(%arg0: i32, %arg1: i32, %arg2: memref<8x8xi8, #tpu.memory_space<vmem>>, %arg3: memref<1x8x32xbf16, #tpu.memory_space<vmem>>, %arg4: memref<1x8x32xbf16, #tpu.memory_space<vmem>>, %arg5: memref<1x8x32xbf16, #tpu.memory_space<vmem>>, %arg6: memref<32x32xbf16, #tpu.memory_space<vmem>>, %arg7: memref<32x32xbf16, #tpu.memory_space<vmem>>, %arg8: memref<32x32xbf16, #tpu.memory_space<vmem>>, %arg9: memref<32x32xbf16, #tpu.memory_space<vmem>>, %arg10: memref<1x8x32xf32, #tpu.memory_space<vmem>>, %arg11: memref<8x32xbf16, #tpu.memory_space<vmem>>, %arg12: memref<8x32xbf16, #tpu.memory_space<vmem>>) attributes {dimension_semantics = [#tpu.dimension_semantics<parallel>, #tpu.dimension_semantics<arbitrary>], iteration_bounds = array<i64: 2, 1>, scalar_prefetch = 0 : i64, scratch_operands = 2 : i64, tpu.core_type = #tpu.core_type<tc>, window_params = [{transform_indices = @transform_0, window_bounds = array<i64: 8, 8>}, {transform_indices = @transform_1, window_bounds = array<i64: 1, 8, 32>}, {transform_indices = @transform_2, window_bounds = array<i64: 1, 8, 32>}, {transform_indices = @transform_3, window_bounds = array<i64: 1, 8, 32>}, {pipeline_mode = #tpu.pipeline_mode<synchronous>, transform_indices = @transform_4, window_bounds = array<i64: 32, 32>}, {pipeline_mode = #tpu.pipeline_mode<synchronous>, transform_indices = @transform_5, window_bounds = array<i64: 32, 32>}, {pipeline_mode = #tpu.pipeline_mode<synchronous>, transform_indices = @transform_6, window_bounds = array<i64: 32, 32>}, {pipeline_mode = #tpu.pipeline_mode<synchronous>, transform_indices = @transform_7, window_bounds = array<i64: 32, 32>}, {transform_indices = @transform_8, window_bounds = array<i64: 1, 8, 32>}]} {
    %c0_i32 = arith.constant 0 : i32
    %0 = arith.cmpi eq, %arg1, %c0_i32 : i32
    %1 = arith.extui %0 : i1 to i32
    %c0_i32_0 = arith.constant 0 : i32
    %2 = arith.cmpi ne, %1, %c0_i32_0 : i32
    scf.if %2 {
      %c0_38 = arith.constant 0 : index
      %c0_39 = arith.constant 0 : index
      %c0_40 = arith.constant 0 : index
      %103 = vector.load %arg4[%c0_38, %c0_39, %c0_40] : memref<1x8x32xbf16, #tpu.memory_space<vmem>>, vector<1x8x32xbf16>
      %104 = vector.shape_cast %103 : vector<1x8x32xbf16> to vector<8x32xbf16>
      %c0_41 = arith.constant 0 : index
      %c0_42 = arith.constant 0 : index
      %105 = vector.load %arg7[%c0_41, %c0_42] : memref<32x32xbf16, #tpu.memory_space<vmem>>, vector<32x32xbf16>
      %cst_43 = arith.constant dense<0.000000e+00> : vector<8x32xf32>
      %106 = tpu.matmul %104, %105, %cst_43 {dimension_numbers = #tpu.dot_dimension_numbers<[1], [0], [0], [1], [0, 0, 1, 1], [], []>} : vector<8x32xbf16>, vector<32x32xbf16>, vector<8x32xf32> -> vector<8x32xf32>
      %107 = arith.truncf %106 : vector<8x32xf32> to vector<8x32xbf16>
      %c0_44 = arith.constant 0 : index
      %c0_45 = arith.constant 0 : index
      %108 = vector.load %arg11[%c0_44, %c0_45] : memref<8x32xbf16, #tpu.memory_space<vmem>>, vector<8x32xbf16>
      tpu.vector_store %arg11[%c0_44, %c0_45], %107 {strides = array<i32>} : memref<8x32xbf16, #tpu.memory_space<vmem>>, vector<8x32xbf16>,
      %c0_46 = arith.constant 0 : index
      %c0_47 = arith.constant 0 : index
      %c0_48 = arith.constant 0 : index
      %109 = vector.load %arg5[%c0_46, %c0_47, %c0_48] : memref<1x8x32xbf16, #tpu.memory_space<vmem>>, vector<1x8x32xbf16>
      %110 = vector.shape_cast %109 : vector<1x8x32xbf16> to vector<8x32xbf16>
      %c0_49 = arith.constant 0 : index
      %c0_50 = arith.constant 0 : index
      %111 = vector.load %arg8[%c0_49, %c0_50] : memref<32x32xbf16, #tpu.memory_space<vmem>>, vector<32x32xbf16>
      %cst_51 = arith.constant dense<0.000000e+00> : vector<8x32xf32>
      %112 = tpu.matmul %110, %111, %cst_51 {dimension_numbers = #tpu.dot_dimension_numbers<[1], [0], [0], [1], [0, 0, 1, 1], [], []>} : vector<8x32xbf16>, vector<32x32xbf16>, vector<8x32xf32> -> vector<8x32xf32>
      %113 = arith.truncf %112 : vector<8x32xf32> to vector<8x32xbf16>
      %c0_52 = arith.constant 0 : index
      %c0_53 = arith.constant 0 : index
      %114 = vector.load %arg12[%c0_52, %c0_53] : memref<8x32xbf16, #tpu.memory_space<vmem>>, vector<8x32xbf16>
      tpu.vector_store %arg12[%c0_52, %c0_53], %113 {strides = array<i32>} : memref<8x32xbf16, #tpu.memory_space<vmem>>, vector<8x32xbf16>,
    } else {
    }
    %c0 = arith.constant 0 : index
    %c0_1 = arith.constant 0 : index
    %c0_2 = arith.constant 0 : index
    %3 = vector.load %arg3[%c0, %c0_1, %c0_2] : memref<1x8x32xbf16, #tpu.memory_space<vmem>>, vector<1x8x32xbf16>
    %4 = vector.shape_cast %3 : vector<1x8x32xbf16> to vector<8x32xbf16>
    %c0_3 = arith.constant 0 : index
    %c0_4 = arith.constant 0 : index
    %5 = vector.load %arg6[%c0_3, %c0_4] : memref<32x32xbf16, #tpu.memory_space<vmem>>, vector<32x32xbf16>
    %cst = arith.constant dense<0.000000e+00> : vector<8x32xf32>
    %6 = tpu.matmul %4, %5, %cst {dimension_numbers = #tpu.dot_dimension_numbers<[1], [0], [0], [1], [0, 0, 1, 1], [], []>} : vector<8x32xbf16>, vector<32x32xbf16>, vector<8x32xf32> -> vector<8x32xf32>
    %7 = arith.truncf %6 : vector<8x32xf32> to vector<8x32xbf16>
    %c0_5 = arith.constant 0 : index
    %c0_6 = arith.constant 0 : index
    %8 = vector.load %arg11[%c0_5, %c0_6] : memref<8x32xbf16, #tpu.memory_space<vmem>>, vector<8x32xbf16>
    %c0_7 = arith.constant 0 : index
    %c0_8 = arith.constant 0 : index
    %9 = vector.load %arg12[%c0_7, %c0_8] : memref<8x32xbf16, #tpu.memory_space<vmem>>, vector<8x32xbf16>
    %c0_9 = arith.constant 0 : index
    %c0_10 = arith.constant 0 : index
    %10 = vector.load %arg9[%c0_9, %c0_10] : memref<32x32xbf16, #tpu.memory_space<vmem>>, vector<32x32xbf16>
    %c0_11 = arith.constant 0 : index
    %c0_12 = arith.constant 0 : index
    %11 = vector.load %arg2[%c0_11, %c0_12] : memref<8x8xi8, #tpu.memory_space<vmem>>, vector<8x8xi8>
    %12 = arith.sitofp %11 : vector<8x8xi8> to vector<8x8xf32>
    %cst_13 = arith.constant -1.000000e+30 : f32
    %13 = vector.broadcast %cst_13 : f32 to vector<8x8xf32>
    %14 = arith.mulf %12, %13 : vector<8x8xf32>
    %cst_14 = arith.constant 0.000000e+00 : f32
    %15 = vector.broadcast %cst_14 : f32 to vector<8x32xf32>
    %16 = vector.extract_strided_slice %7 {offsets = [0, 0], sizes = [8, 8], strides = [1, 1]} : vector<8x32xbf16> to vector<8x8xbf16>
    %17 = vector.extract_strided_slice %8 {offsets = [0, 0], sizes = [8, 8], strides = [1, 1]} : vector<8x32xbf16> to vector<8x8xbf16>
    %18 = vector.extract_strided_slice %9 {offsets = [0, 0], sizes = [8, 8], strides = [1, 1]} : vector<8x32xbf16> to vector<8x8xbf16>
    %cst_15 = arith.constant dense<0.000000e+00> : vector<8x8xf32>
    %19 = tpu.matmul %16, %17, %cst_15 {dimension_numbers = #tpu.dot_dimension_numbers<[1], [1], [0], [0], [0, 0, 1, 0], [], []>} : vector<8x8xbf16>, vector<8x8xbf16>, vector<8x8xf32> -> vector<8x8xf32>
    %20 = arith.addf %19, %14 : vector<8x8xf32>
    %cst_16 = arith.constant dense<0xFF800000> : vector<8xf32>
    %21 = vector.multi_reduction <maximumf>, %20, %cst_16 [1] : vector<8x8xf32> to vector<8xf32>
    %22 = vector.shape_cast %21 : vector<8xf32> to vector<8x1xf32>
    %23 = vector.broadcast %22 : vector<8x1xf32> to vector<8x8xf32>
    %24 = arith.subf %20, %23 : vector<8x8xf32>
    %25 = math.exp %24 : vector<8x8xf32>
    %cst_17 = arith.constant dense<0.000000e+00> : vector<8xf32>
    %26 = vector.multi_reduction <add>, %25, %cst_17 [1] : vector<8x8xf32> to vector<8xf32>
    %27 = vector.shape_cast %26 : vector<8xf32> to vector<8x1xf32>
    %28 = tpu.reciprocal %27 {approx = true} : vector<8x1xf32> -> vector<8x1xf32>
    %29 = vector.broadcast %28 : vector<8x1xf32> to vector<8x8xf32>
    %30 = arith.mulf %25, %29 : vector<8x8xf32>
    %31 = arith.truncf %30 : vector<8x8xf32> to vector<8x8xbf16>
    %cst_18 = arith.constant dense<0.000000e+00> : vector<8x8xf32>
    %32 = tpu.matmul %31, %18, %cst_18 {dimension_numbers = #tpu.dot_dimension_numbers<[1], [0], [0], [1], [0, 0, 1, 1], [], []>} : vector<8x8xbf16>, vector<8x8xbf16>, vector<8x8xf32> -> vector<8x8xf32>
    %33 = arith.truncf %32 : vector<8x8xf32> to vector<8x8xbf16>
    %34 = vector.extract_strided_slice %10 {offsets = [0, 0], sizes = [8, 32], strides = [1, 1]} : vector<32x32xbf16> to vector<8x32xbf16>
    %cst_19 = arith.constant dense<0.000000e+00> : vector<8x32xf32>
    %35 = tpu.matmul %33, %34, %cst_19 {dimension_numbers = #tpu.dot_dimension_numbers<[1], [0], [0], [1], [0, 0, 1, 1], [], []>} : vector<8x8xbf16>, vector<8x32xbf16>, vector<8x32xf32> -> vector<8x32xf32>
    %36 = arith.addf %15, %35 : vector<8x32xf32>
    %37 = vector.extract_strided_slice %7 {offsets = [0, 8], sizes = [8, 8], strides = [1, 1]} : vector<8x32xbf16> to vector<8x8xbf16>
    %38 = vector.extract_strided_slice %8 {offsets = [0, 8], sizes = [8, 8], strides = [1, 1]} : vector<8x32xbf16> to vector<8x8xbf16>
    %39 = vector.extract_strided_slice %9 {offsets = [0, 8], sizes = [8, 8], strides = [1, 1]} : vector<8x32xbf16> to vector<8x8xbf16>
    %cst_20 = arith.constant dense<0.000000e+00> : vector<8x8xf32>
    %40 = tpu.matmul %37, %38, %cst_20 {dimension_numbers = #tpu.dot_dimension_numbers<[1], [1], [0], [0], [0, 0, 1, 0], [], []>} : vector<8x8xbf16>, vector<8x8xbf16>, vector<8x8xf32> -> vector<8x8xf32>
    %41 = arith.addf %40, %14 : vector<8x8xf32>
    %cst_21 = arith.constant dense<0xFF800000> : vector<8xf32>
    %42 = vector.multi_reduction <maximumf>, %41, %cst_21 [1] : vector<8x8xf32> to vector<8xf32>
    %43 = vector.shape_cast %42 : vector<8xf32> to vector<8x1xf32>
    %44 = vector.broadcast %43 : vector<8x1xf32> to vector<8x8xf32>
    %45 = arith.subf %41, %44 : vector<8x8xf32>
    %46 = math.exp %45 : vector<8x8xf32>
    %cst_22 = arith.constant dense<0.000000e+00> : vector<8xf32>
    %47 = vector.multi_reduction <add>, %46, %cst_22 [1] : vector<8x8xf32> to vector<8xf32>
    %48 = vector.shape_cast %47 : vector<8xf32> to vector<8x1xf32>
    %49 = tpu.reciprocal %48 {approx = true} : vector<8x1xf32> -> vector<8x1xf32>
    %50 = vector.broadcast %49 : vector<8x1xf32> to vector<8x8xf32>
    %51 = arith.mulf %46, %50 : vector<8x8xf32>
    %52 = arith.truncf %51 : vector<8x8xf32> to vector<8x8xbf16>
    %cst_23 = arith.constant dense<0.000000e+00> : vector<8x8xf32>
    %53 = tpu.matmul %52, %39, %cst_23 {dimension_numbers = #tpu.dot_dimension_numbers<[1], [0], [0], [1], [0, 0, 1, 1], [], []>} : vector<8x8xbf16>, vector<8x8xbf16>, vector<8x8xf32> -> vector<8x8xf32>
    %54 = arith.truncf %53 : vector<8x8xf32> to vector<8x8xbf16>
    %55 = vector.extract_strided_slice %10 {offsets = [8, 0], sizes = [8, 32], strides = [1, 1]} : vector<32x32xbf16> to vector<8x32xbf16>
    %cst_24 = arith.constant dense<0.000000e+00> : vector<8x32xf32>
    %56 = tpu.matmul %54, %55, %cst_24 {dimension_numbers = #tpu.dot_dimension_numbers<[1], [0], [0], [1], [0, 0, 1, 1], [], []>} : vector<8x8xbf16>, vector<8x32xbf16>, vector<8x32xf32> -> vector<8x32xf32>
    %57 = arith.addf %36, %56 : vector<8x32xf32>
    %58 = vector.extract_strided_slice %7 {offsets = [0, 16], sizes = [8, 8], strides = [1, 1]} : vector<8x32xbf16> to vector<8x8xbf16>
    %59 = vector.extract_strided_slice %8 {offsets = [0, 16], sizes = [8, 8], strides = [1, 1]} : vector<8x32xbf16> to vector<8x8xbf16>
    %60 = vector.extract_strided_slice %9 {offsets = [0, 16], sizes = [8, 8], strides = [1, 1]} : vector<8x32xbf16> to vector<8x8xbf16>
    %cst_25 = arith.constant dense<0.000000e+00> : vector<8x8xf32>
    %61 = tpu.matmul %58, %59, %cst_25 {dimension_numbers = #tpu.dot_dimension_numbers<[1], [1], [0], [0], [0, 0, 1, 0], [], []>} : vector<8x8xbf16>, vector<8x8xbf16>, vector<8x8xf32> -> vector<8x8xf32>
    %62 = arith.addf %61, %14 : vector<8x8xf32>
    %cst_26 = arith.constant dense<0xFF800000> : vector<8xf32>
    %63 = vector.multi_reduction <maximumf>, %62, %cst_26 [1] : vector<8x8xf32> to vector<8xf32>
    %64 = vector.shape_cast %63 : vector<8xf32> to vector<8x1xf32>
    %65 = vector.broadcast %64 : vector<8x1xf32> to vector<8x8xf32>
    %66 = arith.subf %62, %65 : vector<8x8xf32>
    %67 = math.exp %66 : vector<8x8xf32>
    %cst_27 = arith.constant dense<0.000000e+00> : vector<8xf32>
    %68 = vector.multi_reduction <add>, %67, %cst_27 [1] : vector<8x8xf32> to vector<8xf32>
    %69 = vector.shape_cast %68 : vector<8xf32> to vector<8x1xf32>
    %70 = tpu.reciprocal %69 {approx = true} : vector<8x1xf32> -> vector<8x1xf32>
    %71 = vector.broadcast %70 : vector<8x1xf32> to vector<8x8xf32>
    %72 = arith.mulf %67, %71 : vector<8x8xf32>
    %73 = arith.truncf %72 : vector<8x8xf32> to vector<8x8xbf16>
    %cst_28 = arith.constant dense<0.000000e+00> : vector<8x8xf32>
    %74 = tpu.matmul %73, %60, %cst_28 {dimension_numbers = #tpu.dot_dimension_numbers<[1], [0], [0], [1], [0, 0, 1, 1], [], []>} : vector<8x8xbf16>, vector<8x8xbf16>, vector<8x8xf32> -> vector<8x8xf32>
    %75 = arith.truncf %74 : vector<8x8xf32> to vector<8x8xbf16>
    %76 = vector.extract_strided_slice %10 {offsets = [16, 0], sizes = [8, 32], strides = [1, 1]} : vector<32x32xbf16> to vector<8x32xbf16>
    %cst_29 = arith.constant dense<0.000000e+00> : vector<8x32xf32>
    %77 = tpu.matmul %75, %76, %cst_29 {dimension_numbers = #tpu.dot_dimension_numbers<[1], [0], [0], [1], [0, 0, 1, 1], [], []>} : vector<8x8xbf16>, vector<8x32xbf16>, vector<8x32xf32> -> vector<8x32xf32>
    %78 = arith.addf %57, %77 : vector<8x32xf32>
    %79 = vector.extract_strided_slice %7 {offsets = [0, 24], sizes = [8, 8], strides = [1, 1]} : vector<8x32xbf16> to vector<8x8xbf16>
    %80 = vector.extract_strided_slice %8 {offsets = [0, 24], sizes = [8, 8], strides = [1, 1]} : vector<8x32xbf16> to vector<8x8xbf16>
    %81 = vector.extract_strided_slice %9 {offsets = [0, 24], sizes = [8, 8], strides = [1, 1]} : vector<8x32xbf16> to vector<8x8xbf16>
    %cst_30 = arith.constant dense<0.000000e+00> : vector<8x8xf32>
    %82 = tpu.matmul %79, %80, %cst_30 {dimension_numbers = #tpu.dot_dimension_numbers<[1], [1], [0], [0], [0, 0, 1, 0], [], []>} : vector<8x8xbf16>, vector<8x8xbf16>, vector<8x8xf32> -> vector<8x8xf32>
    %83 = arith.addf %82, %14 : vector<8x8xf32>
    %cst_31 = arith.constant dense<0xFF800000> : vector<8xf32>
    %84 = vector.multi_reduction <maximumf>, %83, %cst_31 [1] : vector<8x8xf32> to vector<8xf32>
    %85 = vector.shape_cast %84 : vector<8xf32> to vector<8x1xf32>
    %86 = vector.broadcast %85 : vector<8x1xf32> to vector<8x8xf32>
    %87 = arith.subf %83, %86 : vector<8x8xf32>
    %88 = math.exp %87 : vector<8x8xf32>
    %cst_32 = arith.constant dense<0.000000e+00> : vector<8xf32>
    %89 = vector.multi_reduction <add>, %88, %cst_32 [1] : vector<8x8xf32> to vector<8xf32>
    %90 = vector.shape_cast %89 : vector<8xf32> to vector<8x1xf32>
    %91 = tpu.reciprocal %90 {approx = true} : vector<8x1xf32> -> vector<8x1xf32>
    %92 = vector.broadcast %91 : vector<8x1xf32> to vector<8x8xf32>
    %93 = arith.mulf %88, %92 : vector<8x8xf32>
    %94 = arith.truncf %93 : vector<8x8xf32> to vector<8x8xbf16>
    %cst_33 = arith.constant dense<0.000000e+00> : vector<8x8xf32>
    %95 = tpu.matmul %94, %81, %cst_33 {dimension_numbers = #tpu.dot_dimension_numbers<[1], [0], [0], [1], [0, 0, 1, 1], [], []>} : vector<8x8xbf16>, vector<8x8xbf16>, vector<8x8xf32> -> vector<8x8xf32>
    %96 = arith.truncf %95 : vector<8x8xf32> to vector<8x8xbf16>
    %97 = vector.extract_strided_slice %10 {offsets = [24, 0], sizes = [8, 32], strides = [1, 1]} : vector<32x32xbf16> to vector<8x32xbf16>
    %cst_34 = arith.constant dense<0.000000e+00> : vector<8x32xf32>
    %98 = tpu.matmul %96, %97, %cst_34 {dimension_numbers = #tpu.dot_dimension_numbers<[1], [0], [0], [1], [0, 0, 1, 1], [], []>} : vector<8x8xbf16>, vector<8x32xbf16>, vector<8x32xf32> -> vector<8x32xf32>
    %99 = arith.addf %78, %98 : vector<8x32xf32>
    %c0_35 = arith.constant 0 : index
    %c0_36 = arith.constant 0 : index
    %c0_37 = arith.constant 0 : index
    %100 = vector.load %arg10[%c0_35, %c0_36, %c0_37] : memref<1x8x32xf32, #tpu.memory_space<vmem>>, vector<1x8x32xf32>
    %101 = vector.shape_cast %100 : vector<1x8x32xf32> to vector<8x32xf32>
    %102 = vector.shape_cast %99 : vector<8x32xf32> to vector<1x8x32xf32>
    tpu.vector_store %arg10[%c0_35, %c0_36, %c0_37], %102 {strides = array<i32>} : memref<1x8x32xf32, #tpu.memory_space<vmem>>, vector<1x8x32xf32>,
    return
  }
  func.func @transform_0(%arg0: i32, %arg1: i32) -> (i32, i32) {
    %c0_i32 = arith.constant 0 : i32
    %c0_i32_0 = arith.constant 0 : i32
    return %arg1, %c0_i32 : i32, i32
  }
  func.func @transform_1(%arg0: i32, %arg1: i32) -> (i32, i32, i32) {
    %c0_i32 = arith.constant 0 : i32
    %c0_i32_0 = arith.constant 0 : i32
    return %arg0, %arg1, %c0_i32 : i32, i32, i32
  }
  func.func @transform_2(%arg0: i32, %arg1: i32) -> (i32, i32, i32) {
    %c0_i32 = arith.constant 0 : i32
    %c0_i32_0 = arith.constant 0 : i32
    %c0_i32_1 = arith.constant 0 : i32
    return %arg0, %c0_i32, %c0_i32_0 : i32, i32, i32
  }
  func.func @transform_3(%arg0: i32, %arg1: i32) -> (i32, i32, i32) {
    %c0_i32 = arith.constant 0 : i32
    %c0_i32_0 = arith.constant 0 : i32
    %c0_i32_1 = arith.constant 0 : i32
    return %arg0, %c0_i32, %c0_i32_0 : i32, i32, i32
  }
  func.func @transform_4(%arg0: i32, %arg1: i32) -> (i32, i32) {
    %c0_i32 = arith.constant 0 : i32
    %c0_i32_0 = arith.constant 0 : i32
    %c0_i32_1 = arith.constant 0 : i32
    return %c0_i32, %c0_i32_0 : i32, i32
  }
  func.func @transform_5(%arg0: i32, %arg1: i32) -> (i32, i32) {
    %c0_i32 = arith.constant 0 : i32
    %c0_i32_0 = arith.constant 0 : i32
    %c0_i32_1 = arith.constant 0 : i32
    return %c0_i32, %c0_i32_0 : i32, i32
  }
  func.func @transform_6(%arg0: i32, %arg1: i32) -> (i32, i32) {
    %c0_i32 = arith.constant 0 : i32
    %c0_i32_0 = arith.constant 0 : i32
    %c0_i32_1 = arith.constant 0 : i32
    return %c0_i32, %c0_i32_0 : i32, i32
  }
  func.func @transform_7(%arg0: i32, %arg1: i32) -> (i32, i32) {
    %c0_i32 = arith.constant 0 : i32
    %c0_i32_0 = arith.constant 0 : i32
    %c0_i32_1 = arith.constant 0 : i32
    return %c0_i32, %c0_i32_0 : i32, i32
  }
  func.func @transform_8(%arg0: i32, %arg1: i32) -> (i32, i32, i32) {
    %c0_i32 = arith.constant 0 : i32
    %c0_i32_0 = arith.constant 0 : i32
    return %arg0, %arg1, %c0_i32 : i32, i32, i32
  }
}

</mosaic_0001>

<llo_original>
// kernel: tpu_custom_call.1
$region0: #{tpu_custom_call.1}
  #allocation0 [shape = 'u32[]', space=smem, size = 0x4, offset = 0x4, fixed_abs, tag = 'smem constant byte address 0x4 - core index']
  #allocation1 [shape = 'u32[144,128]{1,0:T(1,128)}', space=vmem, size = 0x12000, scoped, tag = 'internal scratch']
  #allocation2 [shape = 'bf16[8,32]{1,0:T(8,128)(2,1)}', space=vmem, size = 0x800, scoped, tag = 'scratch operand']
  #allocation3 [shape = 'bf16[8,32]{1,0:T(8,128)(2,1)}', space=vmem, size = 0x800, scoped, tag = 'scratch operand']
  %s0 = inlined_call_operand.hbm [shape: s8[8,8], index: 0, kind: input, shape index: {}]
  %s1 = inlined_call_operand.hbm [shape: bf16[2,8,32], index: 1, kind: input, shape index: {}]
  %s2 = inlined_call_operand.hbm [shape: bf16[2,8,32], index: 2, kind: input, shape index: {}]
  %s3 = inlined_call_operand.hbm [shape: bf16[2,8,32], index: 3, kind: input, shape index: {}]
  %s4 = inlined_call_operand.hbm [shape: bf16[32,32], index: 4, kind: input, shape index: {}]
  %s5 = inlined_call_operand.hbm [shape: bf16[32,32], index: 5, kind: input, shape index: {}]
  %s6 = inlined_call_operand.hbm [shape: bf16[32,32], index: 6, kind: input, shape index: {}]
  %s7 = inlined_call_operand.hbm [shape: bf16[32,32], index: 7, kind: input, shape index: {}]
  %s8 = inlined_call_operand.hbm [shape: f32[2,8,32], index: 8, kind: output, shape index: {}]
  %s9 = sld [smem:[#allocation0]]
  $region101: #{tpu_custom_call.1} parent=0
    _
  %s11 = ssub.s32 1, %s9
  %s12 = scalar_select 0, %s11, %s9
  $region1: #{tpu_custom_call.1} parent=0
    #allocation4 [shape = 'u8[1024]{0}', space=vmem, size = 0x400, scoped, tag = 'input window, operand 0, single buffered']
    #allocation5 [shape = 's32[2]{0}', space=sflag, size = 0x8, scoped, tag = 'scoped memory for tpu_custom_call.1']
    #allocation6 [shape = 's32[2]{0}', space=sflag, size = 0x8, scoped, tag = 'scoped memory for tpu_custom_call.1']
    #allocation7 [shape = 'u8[4096]{0}', space=vmem, size = 0x1000, scoped, tag = 'input window, operand 1']
    #allocation8 [shape = 's32[2]{0}', space=sflag, size = 0x8, scoped, tag = 'scoped memory for tpu_custom_call.1']
    #allocation9 [shape = 'u8[4096]{0}', space=vmem, size = 0x1000, scoped, tag = 'input window, operand 2']
    #allocation10 [shape = 'u8[4096]{0}', space=vmem, size = 0x1000, scoped, tag = 'input window, operand 3']
    #allocation11 [shape = 's32[2]{0}', space=sflag, size = 0x8, scoped, tag = 'scoped memory for tpu_custom_call.1']
    #allocation12 [shape = 'u8[8192]{0}', space=vmem, size = 0x2000, scoped, tag = 'input window, operand 4, single buffered']
    #allocation13 [shape = 'u8[8192]{0}', space=vmem, size = 0x2000, scoped, tag = 'input window, operand 5, single buffered']
    #allocation14 [shape = 's32[1]{0}', space=sflag, size = 0x4, scoped, tag = 'scoped memory for tpu_custom_call.1']
    #allocation15 [shape = 'u8[8192]{0}', space=vmem, size = 0x2000, scoped, tag = 'input window, operand 6, single buffered']
    #allocation16 [shape = 'u8[8192]{0}', space=vmem, size = 0x2000, scoped, tag = 'input window, operand 7, single buffered']
    #allocation17 [shape = 's32[1]{0}', space=sflag, size = 0x4, scoped, tag = 'scoped memory for tpu_custom_call.1']
    #allocation18 [shape = 'u8[8192]{0}', space=vmem, size = 0x2000, scoped, tag = 'output window, operand 0']
    %13 = vsyncpa [#allocation5], 0
    %14 = vsyncpa [#allocation8], 0
    %s15 = scalar_lea.sflag [#allocation8], 1
    %16 = vsyncpa %s15, 0
    %17 = vsyncpa [#allocation11], 0
    %s18 = scalar_lea.sflag [#allocation11], 1
    %19 = vsyncpa %s18, 0
    %20 = vsyncpa [#allocation14], 0
    %21 = vsyncpa [#allocation17], 0
    %22 = vsyncpa [#allocation6], 0
    %s23 = scalar_lea.sflag [#allocation6], 1
    %24 = vsyncpa %s23, 0
    loop: start=0, step=1, limit=4
    $region2: #{tpu_custom_call.1} parent=1 // loop_pre_header
      _
    $region3: #{tpu_custom_call.1} parent=1 // loop_header
      %s26 = sphi 0, %s30
      %p27 = scmp.ge.s32.totalorder %s26, 4
      %s33 = sphi 0, %s45
      %s34 = sphi 0, %s41
      %s35 = sphi 0, %s33
      %s36 = sphi 0, %s34
      %s37 = sphi 0, %s35
      %s38 = sphi 0, %s36
      %s48 = sphi 0, %s50
      %s51 = sphi 0, %s48
      %s52 = sphi 0, %s51
      %s68 = sphi 0, %s52
      %s76 = sphi 0, %s78
      %s79 = sphi 0, %s76
      %s80 = sphi 0, %s79
      %s96 = sphi 0, %s80
      %s102 = sphi 0, %s104
      %s105 = sphi 0, %s102
      %s106 = sphi 0, %s105
      %s122 = sphi 0, %s106
      %s128 = sphi 0, %s130
      %s131 = sphi 0, %s128
      %s132 = sphi 0, %s131
      %s148 = sphi 0, %s132
      %s152 = sphi 0, %s152
      %s154 = sphi 0, %s152
      %s155 = sphi 0, %s154
      %s169 = sphi 0, %s155
      %s173 = sphi 0, %s173
      %s175 = sphi 0, %s173
      %s176 = sphi 0, %s175
      %s190 = sphi 0, %s176
      %s194 = sphi 0, %s194
      %s196 = sphi 0, %s194
      %s197 = sphi 0, %s196
      %s211 = sphi 0, %s197
      %s215 = sphi 0, %s215
      %s217 = sphi 0, %s215
      %s218 = sphi 0, %s217
      %s232 = sphi 0, %s218
      %s240 = sphi 0, %s242
      %s243 = sphi 0, %s240
      %s244 = sphi 0, %s243
      %s260 = sphi 0, %s244
    $region4: #{tpu_custom_call.1} parent=1 // loop_header_branch
      %29 = sbr.rel (%p27) target = $region8
    $region5: #{tpu_custom_call.1} parent=1 // loop_body
      %s31 = ssub.s32 %s26, 1
      %s32 = ssub.s32 %s26, 2
      %s39 = sadd.s32 1, %s34
      %p40 = scmp.ge.s32.totalorder %s39, 1
      %s41 = scalar_select %p40, 0, %s39
      %s42 = sadd.s32 1, %s33
      %s43 = scalar_select %p40, %s42, %s33
      %p44 = scmp.ge.s32.totalorder %s43, 2
      %s45 = scalar_select %p44, 0, %s43
      %s46 = ssub.s32 %s34, %s41
      %p47 = scmp.eq.s32.totalorder %s46, 0
      %s49 = sadd.s32 %s48, 1
      %s50 = scalar_select %p47, %s48, %s49
      %p53 = pneg %p47
      %p54 = scmp.eq.s32.totalorder %s26, 1
      %p55 = por %p53, %p54
      %p56 = scmp.ne.s32.totalorder %s48, %s51
      %p57 = scmp.eq.s32.totalorder %s26, 0
      %p58 = por %p56, %p57
      %p59 = scmp.ne.s32.totalorder %s48, %s51
      %p60 = scmp.eq.s32.totalorder %s31, 1
      %p61 = por %p59, %p60
      %p62 = scmp.ne.s32.totalorder %s51, %s52
      %p63 = scmp.eq.s32.totalorder %s31, 0
      %p64 = por %p62, %p63
      %p65 = scmp.ne.s32.totalorder %s51, %s52
      %p66 = scmp.eq.s32.totalorder %s32, 1
      %p67 = por %p65, %p66
      %p69 = scmp.ne.s32.totalorder %s52, %s68
      %p70 = scmp.eq.s32.totalorder %s32, 0
      %p71 = por %p69, %p70
      %s72 = ssub.s32 %s33, %s45
      %s73 = ssub.s32 %s34, %s41
      %s74 = sor.u32 %s72, %s73
      %p75 = scmp.eq.s32.totalorder %s74, 0
      %s77 = sadd.s32 %s76, 1
      %s78 = scalar_select %p75, %s76, %s77
      %p81 = pneg %p75
      %p82 = scmp.eq.s32.totalorder %s26, 1
      %p83 = por %p81, %p82
      %p84 = scmp.ne.s32.totalorder %s76, %s79
      %p85 = scmp.eq.s32.totalorder %s26, 0
      %p86 = por %p84, %p85
      %p87 = scmp.ne.s32.totalorder %s76, %s79
      %p88 = scmp.eq.s32.totalorder %s31, 1
      %p89 = por %p87, %p88
      %p90 = scmp.ne.s32.totalorder %s79, %s80
      %p91 = scmp.eq.s32.totalorder %s31, 0
      %p92 = por %p90, %p91
      %p93 = scmp.ne.s32.totalorder %s79, %s80
      %p94 = scmp.eq.s32.totalorder %s32, 1
      %p95 = por %p93, %p94
      %p97 = scmp.ne.s32.totalorder %s80, %s96
      %p98 = scmp.eq.s32.totalorder %s32, 0
      %p99 = por %p97, %p98
      %s100 = ssub.s32 %s33, %s45
      %p101 = scmp.eq.s32.totalorder %s100, 0
      %s103 = sadd.s32 %s102, 1
      %s104 = scalar_select %p101, %s102, %s103
      %p107 = pneg %p101
      %p108 = scmp.eq.s32.totalorder %s26, 1
      %p109 = por %p107, %p108
      %p110 = scmp.ne.s32.totalorder %s102, %s105
      %p111 = scmp.eq.s32.totalorder %s26, 0
      %p112 = por %p110, %p111
      %p113 = scmp.ne.s32.totalorder %s102, %s105
      %p114 = scmp.eq.s32.totalorder %s31, 1
      %p115 = por %p113, %p114
      %p116 = scmp.ne.s32.totalorder %s105, %s106
      %p117 = scmp.eq.s32.totalorder %s31, 0
      %p118 = por %p116, %p117
      %p119 = scmp.ne.s32.totalorder %s105, %s106
      %p120 = scmp.eq.s32.totalorder %s32, 1
      %p121 = por %p119, %p120
      %p123 = scmp.ne.s32.totalorder %s106, %s122
      %p124 = scmp.eq.s32.totalorder %s32, 0
      %p125 = por %p123, %p124
      %s126 = ssub.s32 %s33, %s45
      %p127 = scmp.eq.s32.totalorder %s126, 0
      %s129 = sadd.s32 %s128, 1
      %s130 = scalar_select %p127, %s128, %s129
      %p133 = pneg %p127
      %p134 = scmp.eq.s32.totalorder %s26, 1
      %p135 = por %p133, %p134
      %p136 = scmp.ne.s32.totalorder %s128, %s131
      %p137 = scmp.eq.s32.totalorder %s26, 0
      %p138 = por %p136, %p137
      %p139 = scmp.ne.s32.totalorder %s128, %s131
      %p140 = scmp.eq.s32.totalorder %s31, 1
      %p141 = por %p139, %p140
      %p142 = scmp.ne.s32.totalorder %s131, %s132
      %p143 = scmp.eq.s32.totalorder %s31, 0
      %p144 = por %p142, %p143
      %p145 = scmp.ne.s32.totalorder %s131, %s132
      %p146 = scmp.eq.s32.totalorder %s32, 1
      %p147 = por %p145, %p146
      %p149 = scmp.ne.s32.totalorder %s132, %s148
      %p150 = scmp.eq.s32.totalorder %s32, 0
      %p151 = por %p149, %p150
      %s153 = sadd.s32 %s152, 1
      %p156 = scmp.eq.s32.totalorder %s26, 1
      %p157 = scmp.ne.s32.totalorder %s152, %s154
      %p158 = scmp.eq.s32.totalorder %s26, 0
      %p159 = por %p157, %p158
      %p160 = scmp.ne.s32.totalorder %s152, %s154
      %p161 = scmp.eq.s32.totalorder %s31, 1
      %p162 = por %p160, %p161
      %p163 = scmp.ne.s32.totalorder %s154, %s155
      %p164 = scmp.eq.s32.totalorder %s31, 0
      %p165 = por %p163, %p164
      %p166 = scmp.ne.s32.totalorder %s154, %s155
      %p167 = scmp.eq.s32.totalorder %s32, 1
      %p168 = por %p166, %p167
      %p170 = scmp.ne.s32.totalorder %s155, %s169
      %p171 = scmp.eq.s32.totalorder %s32, 0
      %p172 = por %p170, %p171
      %s174 = sadd.s32 %s173, 1
      %p177 = scmp.eq.s32.totalorder %s26, 1
      %p178 = scmp.ne.s32.totalorder %s173, %s175
      %p179 = scmp.eq.s32.totalorder %s26, 0
      %p180 = por %p178, %p179
      %p181 = scmp.ne.s32.totalorder %s173, %s175
      %p182 = scmp.eq.s32.totalorder %s31, 1
      %p183 = por %p181, %p182
      %p184 = scmp.ne.s32.totalorder %s175, %s176
      %p185 = scmp.eq.s32.totalorder %s31, 0
      %p186 = por %p184, %p185
      %p187 = scmp.ne.s32.totalorder %s175, %s176
      %p188 = scmp.eq.s32.totalorder %s32, 1
      %p189 = por %p187, %p188
      %p191 = scmp.ne.s32.totalorder %s176, %s190
      %p192 = scmp.eq.s32.totalorder %s32, 0
      %p193 = por %p191, %p192
      %s195 = sadd.s32 %s194, 1
      %p198 = scmp.eq.s32.totalorder %s26, 1
      %p199 = scmp.ne.s32.totalorder %s194, %s196
      %p200 = scmp.eq.s32.totalorder %s26, 0
      %p201 = por %p199, %p200
      %p202 = scmp.ne.s32.totalorder %s194, %s196
      %p203 = scmp.eq.s32.totalorder %s31, 1
      %p204 = por %p202, %p203
      %p205 = scmp.ne.s32.totalorder %s196, %s197
      %p206 = scmp.eq.s32.totalorder %s31, 0
      %p207 = por %p205, %p206
      %p208 = scmp.ne.s32.totalorder %s196, %s197
      %p209 = scmp.eq.s32.totalorder %s32, 1
      %p210 = por %p208, %p209
      %p212 = scmp.ne.s32.totalorder %s197, %s211
      %p213 = scmp.eq.s32.totalorder %s32, 0
      %p214 = por %p212, %p213
      %s216 = sadd.s32 %s215, 1
      %p219 = scmp.eq.s32.totalorder %s26, 1
      %p220 = scmp.ne.s32.totalorder %s215, %s217
      %p221 = scmp.eq.s32.totalorder %s26, 0
      %p222 = por %p220, %p221
      %p223 = scmp.ne.s32.totalorder %s215, %s217
      %p224 = scmp.eq.s32.totalorder %s31, 1
      %p225 = por %p223, %p224
      %p226 = scmp.ne.s32.totalorder %s217, %s218
      %p227 = scmp.eq.s32.totalorder %s31, 0
      %p228 = por %p226, %p227
      %p229 = scmp.ne.s32.totalorder %s217, %s218
      %p230 = scmp.eq.s32.totalorder %s32, 1
      %p231 = por %p229, %p230
      %p233 = scmp.ne.s32.totalorder %s218, %s232
      %p234 = scmp.eq.s32.totalorder %s32, 0
      %p235 = por %p233, %p234
      %s236 = ssub.s32 %s33, %s45
      %s237 = ssub.s32 %s34, %s41
      %s238 = sor.u32 %s236, %s237
      %p239 = scmp.eq.s32.totalorder %s238, 0
      %s241 = sadd.s32 %s240, 1
      %s242 = scalar_select %p239, %s240, %s241
      %p245 = pneg %p239
      %p246 = scmp.eq.s32.totalorder %s26, 1
      %p247 = por %p245, %p246
      %p248 = scmp.ne.s32.totalorder %s240, %s243
      %p249 = scmp.eq.s32.totalorder %s26, 0
      %p250 = por %p248, %p249
      %p251 = scmp.ne.s32.totalorder %s240, %s243
      %p252 = scmp.eq.s32.totalorder %s31, 1
      %p253 = por %p251, %p252
      %p254 = scmp.ne.s32.totalorder %s243, %s244
      %p255 = scmp.eq.s32.totalorder %s31, 0
      %p256 = por %p254, %p255
      %p257 = scmp.ne.s32.totalorder %s243, %s244
      %p258 = scmp.eq.s32.totalorder %s32, 1
      %p259 = por %p257, %p258
      %p261 = scmp.ne.s32.totalorder %s244, %s260
      %p262 = scmp.eq.s32.totalorder %s32, 0
      %p263 = por %p261, %p262
      %p264 = scmp.le.s32.totalorder 1, %s26
      %p265 = scmp.lt.s32.totalorder %s26, 3
      %p266 = pnand %p264, %p265
      %p267 = pneg %p266
      // Predicated region
      $region9: #{tpu_custom_call.1} parent=5 // pred_check
        _
      $region10: #{tpu_custom_call.1} parent=5 // pred_check_branch
        %269 = sbr.rel (%p266) target = $region12
      $region11: #{tpu_custom_call.1} parent=5 // pred_region
        %s270 = ssub.s32 %s26, 1
        // Predicated region
        $region13: #{tpu_custom_call.1} parent=11 // pred_check
          %p271 = pneg %p64
        $region14: #{tpu_custom_call.1} parent=11 // pred_check_branch
          %273 = sbr.rel (%p271) target = $region16
        $region15: #{tpu_custom_call.1} parent=11 // pred_region
          %s275 = ssub.s32 32, 32
          %276 = vsyncadd [#allocation5], %s275
          %s277 = smul.addr %s36, 32
          %s278 = scalar_lea.hbm %s0, %s277
          %s280 = sshll.u32 [#allocation4], 4
          %s281 = int_to_ptr.vmem [resolvable:$true] %s280
          %283 = dma.hbm_to_vmem [thread:$0]  %s278, 32, %s281, [#allocation5]
        $region16: #{tpu_custom_call.1} parent=11 // pred_fallthru
          _
        // Predicated region
        $region17: #{tpu_custom_call.1} parent=11 // pred_check
          %p284 = pneg %p165
        $region18: #{tpu_custom_call.1} parent=11 // pred_check_branch
          %286 = sbr.rel (%p284) target = $region20
        $region19: #{tpu_custom_call.1} parent=11 // pred_region
          %s288 = ssub.s32 256, 256
          %289 = vsyncadd [#allocation11], %s288
          %s290 = sshll.u32 [#allocation12], 4
          %s291 = int_to_ptr.vmem [resolvable:$true] %s290
          %296 = dma.hbm_to_vmem [thread:$0]  %s4, 256, %s291, [#allocation11], 64, 64, 4
        $region20: #{tpu_custom_call.1} parent=11 // pred_fallthru
          _
        // Predicated region
        $region21: #{tpu_custom_call.1} parent=11 // pred_check
          %p297 = pneg %p186
        $region22: #{tpu_custom_call.1} parent=11 // pred_check_branch
          %299 = sbr.rel (%p297) target = $region24
        $region23: #{tpu_custom_call.1} parent=11 // pred_region
          %s301 = ssub.s32 256, 256
          %302 = vsyncadd [#allocation14], %s301
          %s303 = sshll.u32 [#allocation13], 4
          %s304 = int_to_ptr.vmem [resolvable:$true] %s303
          %309 = dma.hbm_to_vmem [thread:$0]  %s5, 256, %s304, [#allocation14], 64, 64, 4
        $region24: #{tpu_custom_call.1} parent=11 // pred_fallthru
          _
        // Predicated region
        $region25: #{tpu_custom_call.1} parent=11 // pred_check
          %p310 = pneg %p207
        $region26: #{tpu_custom_call.1} parent=11 // pred_check_branch
          %312 = sbr.rel (%p310) target = $region28
        $region27: #{tpu_custom_call.1} parent=11 // pred_region
          %s314 = ssub.s32 256, 256
          %315 = vsyncadd [#allocation14], %s314
          %s316 = sshll.u32 [#allocation15], 4
          %s317 = int_to_ptr.vmem [resolvable:$true] %s316
          %322 = dma.hbm_to_vmem [thread:$0]  %s6, 256, %s317, [#allocation14], 64, 64, 4
        $region28: #{tpu_custom_call.1} parent=11 // pred_fallthru
          _
        // Predicated region
        $region29: #{tpu_custom_call.1} parent=11 // pred_check
          %p323 = pneg %p228
        $region30: #{tpu_custom_call.1} parent=11 // pred_check_branch
          %325 = sbr.rel (%p323) target = $region32
        $region31: #{tpu_custom_call.1} parent=11 // pred_region
          %s327 = ssub.s32 256, 256
          %328 = vsyncadd [#allocation17], %s327
          %s329 = sshll.u32 [#allocation16], 4
          %s330 = int_to_ptr.vmem [resolvable:$true] %s329
          %335 = dma.hbm_to_vmem [thread:$0]  %s7, 256, %s330, [#allocation17], 64, 64, 4
        $region32: #{tpu_custom_call.1} parent=11 // pred_fallthru
          _
      $region12: #{tpu_custom_call.1} parent=5 // pred_fallthru
        _
      %p336 = scmp.lt.s32.totalorder %s26, 2
      // Predicated region
      $region33: #{tpu_custom_call.1} parent=5 // pred_check
        %p337 = pneg %p336
      $region34: #{tpu_custom_call.1} parent=5 // pred_check_branch
        %339 = sbr.rel (%p337) target = $region36
      $region35: #{tpu_custom_call.1} parent=5 // pred_region
        // Predicated region
        $region37: #{tpu_custom_call.1} parent=35 // pred_check
          %p340 = pneg %p86
        $region38: #{tpu_custom_call.1} parent=35 // pred_check_branch
          %342 = sbr.rel (%p340) target = $region40
        $region39: #{tpu_custom_call.1} parent=35 // pred_region
          %s343 = sand.u32 %s26, 1
          %s344 = scalar_lea.sflag [#allocation8], %s343
          %s345 = sand.u32 %s76, 1
          %s346 = smul.addr %s345, 4
          %s347 = scalar_lea.vmem [#allocation7], %s346
          %s349 = ssub.s32 64, 64
          %350 = vsyncadd %s344, %s349
          %s351 = sadd.s32 %s34, %s33
          %s352 = smul.addr %s351, 64
          %s353 = scalar_lea.hbm %s1, %s352
          %s355 = sshll.u32 %s347, 4
          %s356 = int_to_ptr.vmem [resolvable:$true] %s355
          %358 = dma.hbm_to_vmem [thread:$0]  %s353, 64, %s356, %s344
        $region40: #{tpu_custom_call.1} parent=35 // pred_fallthru
          _
        // Predicated region
        $region41: #{tpu_custom_call.1} parent=35 // pred_check
          %p359 = pneg %p112
        $region42: #{tpu_custom_call.1} parent=35 // pred_check_branch
          %361 = sbr.rel (%p359) target = $region44
        $region43: #{tpu_custom_call.1} parent=35 // pred_region
          %s362 = sand.u32 %s26, 1
          %s363 = scalar_lea.sflag [#allocation8], %s362
          %s364 = sand.u32 %s102, 1
          %s365 = smul.addr %s364, 4
          %s366 = scalar_lea.vmem [#allocation9], %s365
          %s368 = ssub.s32 64, 64
          %369 = vsyncadd %s363, %s368
          %s370 = smul.addr %s33, 64
          %s371 = scalar_lea.hbm %s2, %s370
          %s373 = sshll.u32 %s366, 4
          %s374 = int_to_ptr.vmem [resolvable:$true] %s373
          %376 = dma.hbm_to_vmem [thread:$0]  %s371, 64, %s374, %s363
        $region44: #{tpu_custom_call.1} parent=35 // pred_fallthru
          _
        // Predicated region
        $region45: #{tpu_custom_call.1} parent=35 // pred_check
          %p377 = pneg %p138
        $region46: #{tpu_custom_call.1} parent=35 // pred_check_branch
          %379 = sbr.rel (%p377) target = $region48
        $region47: #{tpu_custom_call.1} parent=35 // pred_region
          %s380 = sand.u32 %s26, 1
          %s381 = scalar_lea.sflag [#allocation11], %s380
          %s382 = sand.u32 %s128, 1
          %s383 = smul.addr %s382, 4
          %s384 = scalar_lea.vmem [#allocation10], %s383
          %s386 = ssub.s32 64, 64
          %387 = vsyncadd %s381, %s386
          %s388 = smul.addr %s33, 64
          %s389 = scalar_lea.hbm %s3, %s388
          %s391 = sshll.u32 %s384, 4
          %s392 = int_to_ptr.vmem [resolvable:$true] %s391
          %394 = dma.hbm_to_vmem [thread:$0]  %s389, 64, %s392, %s381
        $region48: #{tpu_custom_call.1} parent=35 // pred_fallthru
          _
      $region36: #{tpu_custom_call.1} parent=5 // pred_fallthru
        _
      %p395 = scmp.le.s32.totalorder 1, %s26
      %p396 = scmp.lt.s32.totalorder %s26, 3
      %p397 = pnand %p395, %p396
      %p398 = pneg %p397
      // Predicated region
      $region49: #{tpu_custom_call.1} parent=5 // pred_check
        _
      $region50: #{tpu_custom_call.1} parent=5 // pred_check_branch
        %400 = sbr.rel (%p397) target = $region52
      $region51: #{tpu_custom_call.1} parent=5 // pred_region
        %s401 = ssub.s32 %s26, 1
        // Predicated region
        $region53: #{tpu_custom_call.1} parent=51 // pred_check
          %p402 = pneg %p64
        $region54: #{tpu_custom_call.1} parent=51 // pred_check_branch
          %404 = sbr.rel (%p402) target = $region56
        $region55: #{tpu_custom_call.1} parent=51 // pred_region
          %405 = dma.done [#allocation5], 32
        $region56: #{tpu_custom_call.1} parent=51 // pred_fallthru
          _
        %s406 = sand.u32 %s31, 1
        %s407 = scalar_lea.sflag [#allocation8], %s406
        %s408 = sand.u32 %s79, 1
        %s409 = smul.addr %s408, 4
        %s410 = scalar_lea.vmem [#allocation7], %s409
        // Predicated region
        $region57: #{tpu_custom_call.1} parent=51 // pred_check
          %p411 = pneg %p92
        $region58: #{tpu_custom_call.1} parent=51 // pred_check_branch
          %413 = sbr.rel (%p411) target = $region60
        $region59: #{tpu_custom_call.1} parent=51 // pred_region
          %414 = dma.done %s407, 64
        $region60: #{tpu_custom_call.1} parent=51 // pred_fallthru
          _
        %s415 = sand.u32 %s31, 1
        %s416 = scalar_lea.sflag [#allocation8], %s415
        %s417 = sand.u32 %s105, 1
        %s418 = smul.addr %s417, 4
        %s419 = scalar_lea.vmem [#allocation9], %s418
        // Predicated region
        $region61: #{tpu_custom_call.1} parent=51 // pred_check
          %p420 = pneg %p118
        $region62: #{tpu_custom_call.1} parent=51 // pred_check_branch
          %422 = sbr.rel (%p420) target = $region64
        $region63: #{tpu_custom_call.1} parent=51 // pred_region
          %423 = dma.done %s416, 64
        $region64: #{tpu_custom_call.1} parent=51 // pred_fallthru
          _
        %s424 = sand.u32 %s31, 1
        %s425 = scalar_lea.sflag [#allocation11], %s424
        %s426 = sand.u32 %s131, 1
        %s427 = smul.addr %s426, 4
        %s428 = scalar_lea.vmem [#allocation10], %s427
        // Predicated region
        $region65: #{tpu_custom_call.1} parent=51 // pred_check
          %p429 = pneg %p144
        $region66: #{tpu_custom_call.1} parent=51 // pred_check_branch
          %431 = sbr.rel (%p429) target = $region68
        $region67: #{tpu_custom_call.1} parent=51 // pred_region
          %432 = dma.done %s425, 64
        $region68: #{tpu_custom_call.1} parent=51 // pred_fallthru
          _
        // Predicated region
        $region69: #{tpu_custom_call.1} parent=51 // pred_check
          %p433 = pneg %p165
        $region70: #{tpu_custom_call.1} parent=51 // pred_check_branch
          %435 = sbr.rel (%p433) target = $region72
        $region71: #{tpu_custom_call.1} parent=51 // pred_region
          %436 = dma.done [#allocation11], 256
        $region72: #{tpu_custom_call.1} parent=51 // pred_fallthru
          _
        // Predicated region
        $region73: #{tpu_custom_call.1} parent=51 // pred_check
          %p437 = pneg %p186
        $region74: #{tpu_custom_call.1} parent=51 // pred_check_branch
          %439 = sbr.rel (%p437) target = $region76
        $region75: #{tpu_custom_call.1} parent=51 // pred_region
          %440 = dma.done [#allocation14], 256
        $region76: #{tpu_custom_call.1} parent=51 // pred_fallthru
          _
        // Predicated region
        $region77: #{tpu_custom_call.1} parent=51 // pred_check
          %p441 = pneg %p207
        $region78: #{tpu_custom_call.1} parent=51 // pred_check_branch
          %443 = sbr.rel (%p441) target = $region80
        $region79: #{tpu_custom_call.1} parent=51 // pred_region
          %444 = dma.done [#allocation14], 256
        $region80: #{tpu_custom_call.1} parent=51 // pred_fallthru
          _
        // Predicated region
        $region81: #{tpu_custom_call.1} parent=51 // pred_check
          %p445 = pneg %p228
        $region82: #{tpu_custom_call.1} parent=51 // pred_check_branch
          %447 = sbr.rel (%p445) target = $region84
        $region83: #{tpu_custom_call.1} parent=51 // pred_region
          %448 = dma.done [#allocation17], 256
        $region84: #{tpu_custom_call.1} parent=51 // pred_fallthru
          _
        %p449 = pneg %p64
        %p450 = pneg %p61
        %s451 = sand.u32 %s31, 1
        %s452 = scalar_lea.sflag [#allocation8], %s451
        %s453 = sand.u32 %s79, 1
        %s454 = smul.addr %s453, 4
        %s455 = scalar_lea.vmem [#allocation7], %s454
        %p456 = pneg %p92
        %p457 = pneg %p89
        %s458 = sand.u32 %s31, 1
        %s459 = scalar_lea.sflag [#allocation8], %s458
        %s460 = sand.u32 %s105, 1
        %s461 = smul.addr %s460, 4
        %s462 = scalar_lea.vmem [#allocation9], %s461
        %p463 = pneg %p118
        %p464 = pneg %p115
        %s465 = sand.u32 %s31, 1
        %s466 = scalar_lea.sflag [#allocation11], %s465
        %s467 = sand.u32 %s131, 1
        %s468 = smul.addr %s467, 4
        %s469 = scalar_lea.vmem [#allocation10], %s468
        %p470 = pneg %p144
        %p471 = pneg %p141
        %p472 = pneg %p165
        %p473 = pneg %p162
        %p474 = pneg %p186
        %p475 = pneg %p183
        %p476 = pneg %p207
        %p477 = pneg %p204
        %p478 = pneg %p228
        %p479 = pneg %p225
        %p480 = pneg %p256
        %p481 = pneg %p253
        %s482 = sand.u32 %s243, 1
        %s483 = scalar_lea.sflag [#allocation6], %s482
        %s484 = sand.u32 %s243, 1
        %s485 = smul.addr %s484, 8
        %s486 = scalar_lea.vmem [#allocation18], %s485
        %p488 = scmp.eq.s32.totalorder %s36, 0
        // Predicated region
        $region85: #{tpu_custom_call.1} parent=51 // pred_check
          %p489 = pneg %p488
        $region86: #{tpu_custom_call.1} parent=51 // pred_check_branch
          %491 = sbr.rel (%p489) target = $region88
        $region87: #{tpu_custom_call.1} parent=51 // pred_region
          %v492 = vld [vmem:[%s419] sm:$0xf]
          %v493 = vld [vmem:[#allocation13] sm:$0xf]
          %v494 = vld [vmem:[#allocation13 + $0x4] sm:$0xf]
          %v495 = vld [vmem:[#allocation13 + $0x8] sm:$0xf]
          %v496 = vld [vmem:[#allocation13 + $0xc] sm:$0xf]
          %v501 = vunpack.c.l.b16 %v493
          %v502 = vunpack.c.l.b16 %v494
          %v503 = vunpack.c.l.b16 %v495
          %v504 = vunpack.c.l.b16 %v496
          %v505 = vpack.c.b16 %v502, %v501
          %v506 = vpack.c.b16 %v504, %v503
          %vm509 = vcmask 261120
          %v511 = vsel %vm509, %v492, 0
          %513 = vmatprep.subr.bf16.mxu0 0
          %514 = vmatpush1.bf16.msra.mxu0 %v505
          %515 = vmatprep.subr.bf16.mxu0 0
          %516 = vmatpush1.bf16.msra.mxu0 %v506
          %517 = vmatprep.subr.bf16.mxu0 0
          %518 = vmatpush1.bf16.msra.mxu0 0
          %519 = vmatprep.subr.bf16.mxu0 0
          %520 = vmatpush1.bf16.msra.mxu0 0
          %521 = vmatprep.subr.bf16.mxu0 0
          %522 = vmatpush1.bf16.msra.mxu0 0
          %523 = vmatprep.subr.bf16.mxu0 0
          %524 = vmatpush1.bf16.msra.mxu0 0
          %525 = vmatprep.subr.bf16.mxu0 0
          %526 = vmatpush1.bf16.msra.mxu0 0
          %527 = vmatprep.subr.bf16.mxu0 0
          %528 = vmatpush1.bf16.msra.mxu0 0
          %529 = vmatprep.subr.bf16.mxu0 0
          %530 = vmatpush1.bf16.msra.mxu0 0
          %531 = vmatprep.subr.bf16.mxu0 0
          %532 = vmatpush1.bf16.msra.mxu0 0
          %533 = vmatprep.subr.bf16.mxu0 0
          %534 = vmatpush1.bf16.msra.mxu0 0
          %535 = vmatprep.subr.bf16.mxu0 0
          %536 = vmatpush1.bf16.msra.mxu0 0
          %537 = vmatprep.subr.bf16.mxu0 0
          %538 = vmatpush1.bf16.msra.mxu0 0
          %539 = vmatprep.subr.bf16.mxu0 0
          %540 = vmatpush1.bf16.msra.mxu0 0
          %541 = vmatprep.subr.bf16.mxu0 0
          %542 = vmatpush1.bf16.msra.mxu0 0
          %543 = vmatprep.subr.bf16.mxu0 0
          %544 = vmatpush1.bf16.msra.mxu0 0
          %545 = vmatprep.mubr.bf16.mxu0 0
          %546 = vmatmul.mubr.bf16.gmra.mrb[0].mxu0 %v511
          %v547 = vpop.f32.mrb[0].mxu0
          %v548 = vadd.f32 0.0, %v547
          %v549 = vpop.f32.mrb[0].mxu0
          %v550 = vpop.f32.mrb[0].mxu0
          %v551 = vpop.f32.mrb[0].mxu0
          %552 = vdwg.mxu0
          %v553 = vpack.c.bf16 %v548, %v548
          %vm554 = vcmask 257024
          %555 = vst.msk [vmem:[#allocation2] sm:$0xf] %vm554, %v553
          %v556 = vld [vmem:[%s428] sm:$0xf]
          %v557 = vld [vmem:[#allocation15] sm:$0xf]
          %v558 = vld [vmem:[#allocation15 + $0x4] sm:$0xf]
          %v559 = vld [vmem:[#allocation15 + $0x8] sm:$0xf]
          %v560 = vld [vmem:[#allocation15 + $0xc] sm:$0xf]
          %v565 = vunpack.c.l.b16 %v557
          %v566 = vunpack.c.l.b16 %v558
          %v567 = vunpack.c.l.b16 %v559
          %v568 = vunpack.c.l.b16 %v560
          %v569 = vpack.c.b16 %v566, %v565
          %v570 = vpack.c.b16 %v568, %v567
          %v574 = vsel %vm509, %v556, 0
          %576 = vmatprep.subr.bf16.mxu0 0
          %577 = vmatpush1.bf16.msra.mxu0 %v569
          %578 = vmatprep.subr.bf16.mxu0 0
          %579 = vmatpush1.bf16.msra.mxu0 %v570
          %580 = vmatprep.subr.bf16.mxu0 0
          %581 = vmatpush1.bf16.msra.mxu0 0
          %582 = vmatprep.subr.bf16.mxu0 0
          %583 = vmatpush1.bf16.msra.mxu0 0
          %584 = vmatprep.subr.bf16.mxu0 0
          %585 = vmatpush1.bf16.msra.mxu0 0
          %586 = vmatprep.subr.bf16.mxu0 0
          %587 = vmatpush1.bf16.msra.mxu0 0
          %588 = vmatprep.subr.bf16.mxu0 0
          %589 = vmatpush1.bf16.msra.mxu0 0
          %590 = vmatprep.subr.bf16.mxu0 0
          %591 = vmatpush1.bf16.msra.mxu0 0
          %592 = vmatprep.subr.bf16.mxu0 0
          %593 = vmatpush1.bf16.msra.mxu0 0
          %594 = vmatprep.subr.bf16.mxu0 0
          %595 = vmatpush1.bf16.msra.mxu0 0
          %596 = vmatprep.subr.bf16.mxu0 0
          %597 = vmatpush1.bf16.msra.mxu0 0
          %598 = vmatprep.subr.bf16.mxu0 0
          %599 = vmatpush1.bf16.msra.mxu0 0
          %600 = vmatprep.subr.bf16.mxu0 0
          %601 = vmatpush1.bf16.msra.mxu0 0
          %602 = vmatprep.subr.bf16.mxu0 0
          %603 = vmatpush1.bf16.msra.mxu0 0
          %604 = vmatprep.subr.bf16.mxu0 0
          %605 = vmatpush1.bf16.msra.mxu0 0
          %606 = vmatprep.subr.bf16.mxu0 0
          %607 = vmatpush1.bf16.msra.mxu0 0
          %608 = vmatprep.mubr.bf16.mxu0 0
          %609 = vmatmul.mubr.bf16.gmra.mrb[0].mxu0 %v574
          %v610 = vpop.f32.mrb[0].mxu0
          %v611 = vadd.f32 0.0, %v610
          %v612 = vpop.f32.mrb[0].mxu0
          %v613 = vpop.f32.mrb[0].mxu0
          %v614 = vpop.f32.mrb[0].mxu0
          %615 = vdwg.mxu0
          %v616 = vpack.c.bf16 %v611, %v611
          %617 = vst.msk [vmem:[#allocation3] sm:$0xf] %vm554, %v616
        $region88: #{tpu_custom_call.1} parent=51 // pred_fallthru
          _
        %v618 = vld [vmem:[%s410] sm:$0xf]
        %v619 = vld [vmem:[#allocation12] sm:$0xf]
        %v620 = vld [vmem:[#allocation12 + $0x4] sm:$0xf]
        %v621 = vld [vmem:[#allocation12 + $0x8] sm:$0xf]
        %v622 = vld [vmem:[#allocation12 + $0xc] sm:$0xf]
        %v627 = vunpack.c.l.b16 %v619
        %v628 = vunpack.c.l.b16 %v620
        %v629 = vunpack.c.l.b16 %v621
        %v630 = vunpack.c.l.b16 %v622
        %v631 = vpack.c.b16 %v628, %v627
        %v632 = vpack.c.b16 %v630, %v629
        %vm635 = vcmask 261120
        %v637 = vsel %vm635, %v618, 0
        %639 = vmatprep.subr.bf16.mxu0 0
        %640 = vmatpush1.bf16.msra.mxu0 %v631
        %641 = vmatprep.subr.bf16.mxu0 0
        %642 = vmatpush1.bf16.msra.mxu0 %v632
        %643 = vmatprep.subr.bf16.mxu0 0
        %644 = vmatpush1.bf16.msra.mxu0 0
        %645 = vmatprep.subr.bf16.mxu0 0
        %646 = vmatpush1.bf16.msra.mxu0 0
        %647 = vmatprep.subr.bf16.mxu0 0
        %648 = vmatpush1.bf16.msra.mxu0 0
        %649 = vmatprep.subr.bf16.mxu0 0
        %650 = vmatpush1.bf16.msra.mxu0 0
        %651 = vmatprep.subr.bf16.mxu0 0
        %652 = vmatpush1.bf16.msra.mxu0 0
        %653 = vmatprep.subr.bf16.mxu0 0
        %654 = vmatpush1.bf16.msra.mxu0 0
        %655 = vmatprep.subr.bf16.mxu0 0
        %656 = vmatpush1.bf16.msra.mxu0 0
        %657 = vmatprep.subr.bf16.mxu0 0
        %658 = vmatpush1.bf16.msra.mxu0 0
        %659 = vmatprep.subr.bf16.mxu0 0
        %660 = vmatpush1.bf16.msra.mxu0 0
        %661 = vmatprep.subr.bf16.mxu0 0
        %662 = vmatpush1.bf16.msra.mxu0 0
        %663 = vmatprep.subr.bf16.mxu0 0
        %664 = vmatpush1.bf16.msra.mxu0 0
        %665 = vmatprep.subr.bf16.mxu0 0
        %666 = vmatpush1.bf16.msra.mxu0 0
        %667 = vmatprep.subr.bf16.mxu0 0
        %668 = vmatpush1.bf16.msra.mxu0 0
        %669 = vmatprep.subr.bf16.mxu0 0
        %670 = vmatpush1.bf16.msra.mxu0 0
        %671 = vmatprep.mubr.bf16.mxu0 0
        %672 = vmatmul.mubr.bf16.gmra.mrb[0].mxu0 %v637
        %v673 = vpop.f32.mrb[0].mxu0
        %v674 = vadd.f32 0.0, %v673
        %v675 = vpop.f32.mrb[0].mxu0
        %v676 = vpop.f32.mrb[0].mxu0
        %v677 = vpop.f32.mrb[0].mxu0
        %678 = vdwg.mxu0
        %v679 = vpack.c.bf16 %v674, %v674
        %v680 = vld [vmem:[#allocation2] sm:$0xf]
        %v681 = vld [vmem:[#allocation3] sm:$0xf]
        %v682 = vld [vmem:[#allocation16] sm:$0xf]
        %v683 = vld [vmem:[#allocation16 + $0x4] sm:$0xf]
        %v684 = vld [vmem:[#allocation16 + $0x8] sm:$0xf]
        %v685 = vld [vmem:[#allocation16 + $0xc] sm:$0xf]
        %v686 = vld [vmem:[#allocation4] sm:$0x3]
        %v687 = vunpack.c.0.s8 %v686
        %v688 = vcvt.s32.f32 %v687
        %v689 = vmul.f32 %v688, -1e+30
        %vm690 = vcmask 64512
        %v692 = vsel %vm690, %v679, 0
        %v695 = vsel %vm690, %v680, 0
        %697 = vmatprep.subr.bf16.mxu0 0
        %698 = vmatpush1.bf16.xpose.msra.mxu0 %v695
        %699 = vmatprep.subr.bf16.mxu0 0
        %700 = vmatpush1.bf16.xpose.msra.mxu0 0
        %701 = vmatprep.subr.bf16.mxu0 0
        %702 = vmatpush1.bf16.xpose.msra.mxu0 0
        %703 = vmatprep.subr.bf16.mxu0 0
        %704 = vmatpush1.bf16.xpose.msra.mxu0 0
        %705 = vmatprep.subr.bf16.mxu0 0
        %706 = vmatpush1.bf16.xpose.msra.mxu0 0
        %707 = vmatprep.subr.bf16.mxu0 0
        %708 = vmatpush1.bf16.xpose.msra.mxu0 0
        %709 = vmatprep.subr.bf16.mxu0 0
        %710 = vmatpush1.bf16.xpose.msra.mxu0 0
        %711 = vmatprep.subr.bf16.mxu0 0
        %712 = vmatpush1.bf16.xpose.msra.mxu0 0
        %713 = vmatprep.subr.bf16.mxu0 0
        %714 = vmatpush1.bf16.xpose.msra.mxu0 0
        %715 = vmatprep.subr.bf16.mxu0 0
        %716 = vmatpush1.bf16.xpose.msra.mxu0 0
        %717 = vmatprep.subr.bf16.mxu0 0
        %718 = vmatpush1.bf16.xpose.msra.mxu0 0
        %719 = vmatprep.subr.bf16.mxu0 0
        %720 = vmatpush1.bf16.xpose.msra.mxu0 0
        %721 = vmatprep.subr.bf16.mxu0 0
        %722 = vmatpush1.bf16.xpose.msra.mxu0 0
        %723 = vmatprep.subr.bf16.mxu0 0
        %724 = vmatpush1.bf16.xpose.msra.mxu0 0
        %725 = vmatprep.subr.bf16.mxu0 0
        %726 = vmatpush1.bf16.xpose.msra.mxu0 0
        %727 = vmatprep.subr.bf16.mxu0 0
        %728 = vmatpush1.bf16.xpose.msra.mxu0 0
        %729 = vmatprep.mubr.bf16.mxu0 0
        %730 = vmatmul.mubr.bf16.gmra.mrb[0].mxu0 %v692
        %v731 = vpop.f32.mrb[0].mxu0
        %v732 = vadd.f32 %v689, %v731
        %v733 = vpop.f32.mrb[0].mxu0
        %v734 = vpop.f32.mrb[0].mxu0
        %v735 = vpop.f32.mrb[0].mxu0
        %736 = vdwg.mxu0
        %v737 = vsel %vm690, %v732, -inf
        %738 = vmax.xlane.f32.xlu0 %v737
        %v739 = vpop.xlane.xlu0 %738
        %v740 = vsub.f32 %v732, %v739
        %v741 = vmul.f32 %v740, 1.442695
        %v742 = vpow.pop %v741
        %v743 = vsel %vm690, %v742, 0.0
        %744 = vadd.xlane.f32.xlu0 %v743
        %v745 = vpop.xlane.xlu0 %744
        %v746 = vrcp.pop %v745
        %v747 = vmul.f32 %v742, %v746
        %v748 = vpack.c.bf16 %v747, %v747
        %v750 = vsel %vm690, %v748, 0
        %vm752 = vcmask 1043456
        %v754 = vsel %vm752, %v681, 0
        %756 = vmatprep.subr.bf16.mxu0 0
        %757 = vmatpush1.bf16.msra.mxu0 %v754
        %758 = vmatprep.subr.bf16.mxu0 0
        %759 = vmatpush1.bf16.msra.mxu0 0
        %760 = vmatprep.subr.bf16.mxu0 0
        %761 = vmatpush1.bf16.msra.mxu0 0
        %762 = vmatprep.subr.bf16.mxu0 0
        %763 = vmatpush1.bf16.msra.mxu0 0
        %764 = vmatprep.subr.bf16.mxu0 0
        %765 = vmatpush1.bf16.msra.mxu0 0
        %766 = vmatprep.subr.bf16.mxu0 0
        %767 = vmatpush1.bf16.msra.mxu0 0
        %768 = vmatprep.subr.bf16.mxu0 0
        %769 = vmatpush1.bf16.msra.mxu0 0
        %770 = vmatprep.subr.bf16.mxu0 0
        %771 = vmatpush1.bf16.msra.mxu0 0
        %772 = vmatprep.subr.bf16.mxu0 0
        %773 = vmatpush1.bf16.msra.mxu0 0
        %774 = vmatprep.subr.bf16.mxu0 0
        %775 = vmatpush1.bf16.msra.mxu0 0
        %776 = vmatprep.subr.bf16.mxu0 0
        %777 = vmatpush1.bf16.msra.mxu0 0
        %778 = vmatprep.subr.bf16.mxu0 0
        %779 = vmatpush1.bf16.msra.mxu0 0
        %780 = vmatprep.subr.bf16.mxu0 0
        %781 = vmatpush1.bf16.msra.mxu0 0
        %782 = vmatprep.subr.bf16.mxu0 0
        %783 = vmatpush1.bf16.msra.mxu0 0
        %784 = vmatprep.subr.bf16.mxu0 0
        %785 = vmatpush1.bf16.msra.mxu0 0
        %786 = vmatprep.subr.bf16.mxu0 0
        %787 = vmatpush1.bf16.msra.mxu0 0
        %788 = vmatprep.mubr.bf16.mxu0 0
        %789 = vmatmul.mubr.bf16.gmra.mrb[0].mxu0 %v750
        %v790 = vpop.f32.mrb[0].mxu0
        %v791 = vadd.f32 0.0, %v790
        %v792 = vpop.f32.mrb[0].mxu0
        %v793 = vpop.f32.mrb[0].mxu0
        %v794 = vpop.f32.mrb[0].mxu0
        %795 = vdwg.mxu0
        %v796 = vpack.c.bf16 %v791, %v791
        %798 = vrot.lane.b32.xlu0 %v679, 120
        %v799 = vpop.permute.xlu0 %798
        %v801 = vunpack.c.l.b16 %v680
        %v802 = vpack.c.b16 %v801, %v801
        %803 = vrot.lane.b32.xlu0 %v802, 120
        %v804 = vpop.permute.xlu0 %803
        %v806 = vsel %vm690, %v799, 0
        %v809 = vsel %vm690, %v804, 0
        %811 = vmatprep.subr.bf16.mxu0 0
        %812 = vmatpush1.bf16.xpose.msra.mxu0 %v809
        %813 = vmatprep.subr.bf16.mxu0 0
        %814 = vmatpush1.bf16.xpose.msra.mxu0 0
        %815 = vmatprep.subr.bf16.mxu0 0
        %816 = vmatpush1.bf16.xpose.msra.mxu0 0
        %817 = vmatprep.subr.bf16.mxu0 0
        %818 = vmatpush1.bf16.xpose.msra.mxu0 0
        %819 = vmatprep.subr.bf16.mxu0 0
        %820 = vmatpush1.bf16.xpose.msra.mxu0 0
        %821 = vmatprep.subr.bf16.mxu0 0
        %822 = vmatpush1.bf16.xpose.msra.mxu0 0
        %823 = vmatprep.subr.bf16.mxu0 0
        %824 = vmatpush1.bf16.xpose.msra.mxu0 0
        %825 = vmatprep.subr.bf16.mxu0 0
        %826 = vmatpush1.bf16.xpose.msra.mxu0 0
        %827 = vmatprep.subr.bf16.mxu0 0
        %828 = vmatpush1.bf16.xpose.msra.mxu0 0
        %829 = vmatprep.subr.bf16.mxu0 0
        %830 = vmatpush1.bf16.xpose.msra.mxu0 0
        %831 = vmatprep.subr.bf16.mxu0 0
        %832 = vmatpush1.bf16.xpose.msra.mxu0 0
        %833 = vmatprep.subr.bf16.mxu0 0
        %834 = vmatpush1.bf16.xpose.msra.mxu0 0
        %835 = vmatprep.subr.bf16.mxu0 0
        %836 = vmatpush1.bf16.xpose.msra.mxu0 0
        %837 = vmatprep.subr.bf16.mxu0 0
        %838 = vmatpush1.bf16.xpose.msra.mxu0 0
        %839 = vmatprep.subr.bf16.mxu0 0
        %840 = vmatpush1.bf16.xpose.msra.mxu0 0
        %841 = vmatprep.subr.bf16.mxu0 0
        %842 = vmatpush1.bf16.xpose.msra.mxu0 0
        %843 = vmatprep.mubr.bf16.mxu0 0
        %844 = vmatmul.mubr.bf16.gmra.mrb[0].mxu0 %v806
        %v845 = vpop.f32.mrb[0].mxu0
        %v846 = vadd.f32 %v689, %v845
        %v847 = vpop.f32.mrb[0].mxu0
        %v848 = vpop.f32.mrb[0].mxu0
        %v849 = vpop.f32.mrb[0].mxu0
        %850 = vdwg.mxu0
        %v851 = vsel %vm690, %v846, -inf
        %852 = vmax.xlane.f32.xlu0 %v851
        %v853 = vpop.xlane.xlu0 %852
        %v854 = vsub.f32 %v846, %v853
        %v855 = vmul.f32 %v854, 1.442695
        %v856 = vpow.pop %v855
        %v857 = vsel %vm690, %v856, 0.0
        %858 = vadd.xlane.f32.xlu0 %v857
        %v859 = vpop.xlane.xlu0 %858
        %v860 = vrcp.pop %v859
        %v861 = vmul.f32 %v856, %v860
        %v862 = vpack.c.bf16 %v861, %v861
        %v864 = vunpack.c.l.b16 %v681
        %v865 = vpack.c.b16 %v864, %v864
        %866 = vrot.lane.b32.xlu0 %v865, 120
        %v867 = vpop.permute.xlu0 %866
        %v869 = vsel %vm690, %v862, 0
        %v872 = vsel %vm752, %v867, 0
        %874 = vmatprep.subr.bf16.mxu0 0
        %875 = vmatpush1.bf16.msra.mxu0 %v872
        %876 = vmatprep.subr.bf16.mxu0 0
        %877 = vmatpush1.bf16.msra.mxu0 0
        %878 = vmatprep.subr.bf16.mxu0 0
        %879 = vmatpush1.bf16.msra.mxu0 0
        %880 = vmatprep.subr.bf16.mxu0 0
        %881 = vmatpush1.bf16.msra.mxu0 0
        %882 = vmatprep.subr.bf16.mxu0 0
        %883 = vmatpush1.bf16.msra.mxu0 0
        %884 = vmatprep.subr.bf16.mxu0 0
        %885 = vmatpush1.bf16.msra.mxu0 0
        %886 = vmatprep.subr.bf16.mxu0 0
        %887 = vmatpush1.bf16.msra.mxu0 0
        %888 = vmatprep.subr.bf16.mxu0 0
        %889 = vmatpush1.bf16.msra.mxu0 0
        %890 = vmatprep.subr.bf16.mxu0 0
        %891 = vmatpush1.bf16.msra.mxu0 0
        %892 = vmatprep.subr.bf16.mxu0 0
        %893 = vmatpush1.bf16.msra.mxu0 0
        %894 = vmatprep.subr.bf16.mxu0 0
        %895 = vmatpush1.bf16.msra.mxu0 0
        %896 = vmatprep.subr.bf16.mxu0 0
        %897 = vmatpush1.bf16.msra.mxu0 0
        %898 = vmatprep.subr.bf16.mxu0 0
        %899 = vmatpush1.bf16.msra.mxu0 0
        %900 = vmatprep.subr.bf16.mxu0 0
        %901 = vmatpush1.bf16.msra.mxu0 0
        %902 = vmatprep.subr.bf16.mxu0 0
        %903 = vmatpush1.bf16.msra.mxu0 0
        %904 = vmatprep.subr.bf16.mxu0 0
        %905 = vmatpush1.bf16.msra.mxu0 0
        %906 = vmatprep.mubr.bf16.mxu0 0
        %907 = vmatmul.mubr.bf16.gmra.mrb[0].mxu0 %v869
        %v908 = vpop.f32.mrb[0].mxu0
        %v909 = vadd.f32 0.0, %v908
        %v910 = vpop.f32.mrb[0].mxu0
        %v911 = vpop.f32.mrb[0].mxu0
        %v912 = vpop.f32.mrb[0].mxu0
        %913 = vdwg.mxu0
        %v914 = vpack.c.bf16 %v909, %v909
        %v916 = vsel %vm690, %v914, 0
        %v919 = vsel %vm752, %v683, 0
        %921 = vmatprep.subr.bf16.mxu0 0
        %922 = vmatpush1.bf16.msra.mxu0 %v919
        %923 = vmatprep.subr.bf16.mxu0 0
        %924 = vmatpush1.bf16.msra.mxu0 0
        %925 = vmatprep.subr.bf16.mxu0 0
        %926 = vmatpush1.bf16.msra.mxu0 0
        %927 = vmatprep.subr.bf16.mxu0 0
        %928 = vmatpush1.bf16.msra.mxu0 0
        %929 = vmatprep.subr.bf16.mxu0 0
        %930 = vmatpush1.bf16.msra.mxu0 0
        %931 = vmatprep.subr.bf16.mxu0 0
        %932 = vmatpush1.bf16.msra.mxu0 0
        %933 = vmatprep.subr.bf16.mxu0 0
        %934 = vmatpush1.bf16.msra.mxu0 0
        %935 = vmatprep.subr.bf16.mxu0 0
        %936 = vmatpush1.bf16.msra.mxu0 0
        %937 = vmatprep.subr.bf16.mxu0 0
        %938 = vmatpush1.bf16.msra.mxu0 0
        %939 = vmatprep.subr.bf16.mxu0 0
        %940 = vmatpush1.bf16.msra.mxu0 0
        %941 = vmatprep.subr.bf16.mxu0 0
        %942 = vmatpush1.bf16.msra.mxu0 0
        %943 = vmatprep.subr.bf16.mxu0 0
        %944 = vmatpush1.bf16.msra.mxu0 0
        %945 = vmatprep.subr.bf16.mxu0 0
        %946 = vmatpush1.bf16.msra.mxu0 0
        %947 = vmatprep.subr.bf16.mxu0 0
        %948 = vmatpush1.bf16.msra.mxu0 0
        %949 = vmatprep.subr.bf16.mxu0 0
        %950 = vmatpush1.bf16.msra.mxu0 0
        %951 = vmatprep.subr.bf16.mxu0 0
        %952 = vmatpush1.bf16.msra.mxu0 0
        %953 = vmatprep.mubr.bf16.mxu0 0
        %954 = vmatmul.mubr.bf16.gmra.mrb[0].mxu0 %v916
        %v955 = vpop.f32.mrb[0].mxu0
        %v956 = vadd.f32 0.0, %v955
        %v957 = vpop.f32.mrb[0].mxu0
        %v958 = vpop.f32.mrb[0].mxu0
        %v959 = vpop.f32.mrb[0].mxu0
        %960 = vdwg.mxu0
        %v962 = vsel %vm690, %v796, 0
        %v965 = vsel %vm752, %v682, 0
        %967 = vmatprep.subr.bf16.mxu0 0
        %968 = vmatpush1.bf16.msra.mxu0 %v965
        %969 = vmatprep.subr.bf16.mxu0 0
        %970 = vmatpush1.bf16.msra.mxu0 0
        %971 = vmatprep.subr.bf16.mxu0 0
        %972 = vmatpush1.bf16.msra.mxu0 0
        %973 = vmatprep.subr.bf16.mxu0 0
        %974 = vmatpush1.bf16.msra.mxu0 0
        %975 = vmatprep.subr.bf16.mxu0 0
        %976 = vmatpush1.bf16.msra.mxu0 0
        %977 = vmatprep.subr.bf16.mxu0 0
        %978 = vmatpush1.bf16.msra.mxu0 0
        %979 = vmatprep.subr.bf16.mxu0 0
        %980 = vmatpush1.bf16.msra.mxu0 0
        %981 = vmatprep.subr.bf16.mxu0 0
        %982 = vmatpush1.bf16.msra.mxu0 0
        %983 = vmatprep.subr.bf16.mxu0 0
        %984 = vmatpush1.bf16.msra.mxu0 0
        %985 = vmatprep.subr.bf16.mxu0 0
        %986 = vmatpush1.bf16.msra.mxu0 0
        %987 = vmatprep.subr.bf16.mxu0 0
        %988 = vmatpush1.bf16.msra.mxu0 0
        %989 = vmatprep.subr.bf16.mxu0 0
        %990 = vmatpush1.bf16.msra.mxu0 0
        %991 = vmatprep.subr.bf16.mxu0 0
        %992 = vmatpush1.bf16.msra.mxu0 0
        %993 = vmatprep.subr.bf16.mxu0 0
        %994 = vmatpush1.bf16.msra.mxu0 0
        %995 = vmatprep.subr.bf16.mxu0 0
        %996 = vmatpush1.bf16.msra.mxu0 0
        %997 = vmatprep.subr.bf16.mxu0 0
        %998 = vmatpush1.bf16.msra.mxu0 0
        %999 = vmatprep.mubr.bf16.mxu0 0
        %1000 = vmatmul.mubr.bf16.gmra.mrb[0].mxu0 %v962
        %v1001 = vpop.f32.mrb[0].mxu0
        %v1002 = vadd.f32 %v956, %v1001
        %v1003 = vpop.f32.mrb[0].mxu0
        %v1004 = vpop.f32.mrb[0].mxu0
        %v1005 = vpop.f32.mrb[0].mxu0
        %1006 = vdwg.mxu0
        %1007 = vrot.lane.b32.xlu0 %v679, 112
        %v1008 = vpop.permute.xlu0 %1007
        %1009 = vrot.lane.b32.xlu0 %v802, 112
        %v1010 = vpop.permute.xlu0 %1009
        %v1012 = vsel %vm690, %v1008, 0
        %v1015 = vsel %vm690, %v1010, 0
        %1017 = vmatprep.subr.bf16.mxu0 0
        %1018 = vmatpush1.bf16.xpose.msra.mxu0 %v1015
        %1019 = vmatprep.subr.bf16.mxu0 0
        %1020 = vmatpush1.bf16.xpose.msra.mxu0 0
        %1021 = vmatprep.subr.bf16.mxu0 0
        %1022 = vmatpush1.bf16.xpose.msra.mxu0 0
        %1023 = vmatprep.subr.bf16.mxu0 0
        %1024 = vmatpush1.bf16.xpose.msra.mxu0 0
        %1025 = vmatprep.subr.bf16.mxu0 0
        %1026 = vmatpush1.bf16.xpose.msra.mxu0 0
        %1027 = vmatprep.subr.bf16.mxu0 0
        %1028 = vmatpush1.bf16.xpose.msra.mxu0 0
        %1029 = vmatprep.subr.bf16.mxu0 0
        %1030 = vmatpush1.bf16.xpose.msra.mxu0 0
        %1031 = vmatprep.subr.bf16.mxu0 0
        %1032 = vmatpush1.bf16.xpose.msra.mxu0 0
        %1033 = vmatprep.subr.bf16.mxu0 0
        %1034 = vmatpush1.bf16.xpose.msra.mxu0 0
        %1035 = vmatprep.subr.bf16.mxu0 0
        %1036 = vmatpush1.bf16.xpose.msra.mxu0 0
        %1037 = vmatprep.subr.bf16.mxu0 0
        %1038 = vmatpush1.bf16.xpose.msra.mxu0 0
        %1039 = vmatprep.subr.bf16.mxu0 0
        %1040 = vmatpush1.bf16.xpose.msra.mxu0 0
        %1041 = vmatprep.subr.bf16.mxu0 0
        %1042 = vmatpush1.bf16.xpose.msra.mxu0 0
        %1043 = vmatprep.subr.bf16.mxu0 0
        %1044 = vmatpush1.bf16.xpose.msra.mxu0 0
        %1045 = vmatprep.subr.bf16.mxu0 0
        %1046 = vmatpush1.bf16.xpose.msra.mxu0 0
        %1047 = vmatprep.subr.bf16.mxu0 0
        %1048 = vmatpush1.bf16.xpose.msra.mxu0 0
        %1049 = vmatprep.mubr.bf16.mxu0 0
        %1050 = vmatmul.mubr.bf16.gmra.mrb[0].mxu0 %v1012
        %v1051 = vpop.f32.mrb[0].mxu0
        %v1052 = vadd.f32 %v689, %v1051
        %v1053 = vpop.f32.mrb[0].mxu0
        %v1054 = vpop.f32.mrb[0].mxu0
        %v1055 = vpop.f32.mrb[0].mxu0
        %1056 = vdwg.mxu0
        %v1057 = vsel %vm690, %v1052, -inf
        %1058 = vmax.xlane.f32.xlu0 %v1057
        %v1059 = vpop.xlane.xlu0 %1058
        %v1060 = vsub.f32 %v1052, %v1059
        %v1061 = vmul.f32 %v1060, 1.442695
        %v1062 = vpow.pop %v1061
        %v1063 = vsel %vm690, %v1062, 0.0
        %1064 = vadd.xlane.f32.xlu0 %v1063
        %v1065 = vpop.xlane.xlu0 %1064
        %v1066 = vrcp.pop %v1065
        %v1067 = vmul.f32 %v1062, %v1066
        %v1068 = vpack.c.bf16 %v1067, %v1067
        %1069 = vrot.lane.b32.xlu0 %v865, 112
        %v1070 = vpop.permute.xlu0 %1069
        %v1072 = vsel %vm690, %v1068, 0
        %v1075 = vsel %vm752, %v1070, 0
        %1077 = vmatprep.subr.bf16.mxu0 0
        %1078 = vmatpush1.bf16.msra.mxu0 %v1075
        %1079 = vmatprep.subr.bf16.mxu0 0
        %1080 = vmatpush1.bf16.msra.mxu0 0
        %1081 = vmatprep.subr.bf16.mxu0 0
        %1082 = vmatpush1.bf16.msra.mxu0 0
        %1083 = vmatprep.subr.bf16.mxu0 0
        %1084 = vmatpush1.bf16.msra.mxu0 0
        %1085 = vmatprep.subr.bf16.mxu0 0
        %1086 = vmatpush1.bf16.msra.mxu0 0
        %1087 = vmatprep.subr.bf16.mxu0 0
        %1088 = vmatpush1.bf16.msra.mxu0 0
        %1089 = vmatprep.subr.bf16.mxu0 0
        %1090 = vmatpush1.bf16.msra.mxu0 0
        %1091 = vmatprep.subr.bf16.mxu0 0
        %1092 = vmatpush1.bf16.msra.mxu0 0
        %1093 = vmatprep.subr.bf16.mxu0 0
        %1094 = vmatpush1.bf16.msra.mxu0 0
        %1095 = vmatprep.subr.bf16.mxu0 0
        %1096 = vmatpush1.bf16.msra.mxu0 0
        %1097 = vmatprep.subr.bf16.mxu0 0
        %1098 = vmatpush1.bf16.msra.mxu0 0
        %1099 = vmatprep.subr.bf16.mxu0 0
        %1100 = vmatpush1.bf16.msra.mxu0 0
        %1101 = vmatprep.subr.bf16.mxu0 0
        %1102 = vmatpush1.bf16.msra.mxu0 0
        %1103 = vmatprep.subr.bf16.mxu0 0
        %1104 = vmatpush1.bf16.msra.mxu0 0
        %1105 = vmatprep.subr.bf16.mxu0 0
        %1106 = vmatpush1.bf16.msra.mxu0 0
        %1107 = vmatprep.subr.bf16.mxu0 0
        %1108 = vmatpush1.bf16.msra.mxu0 0
        %1109 = vmatprep.mubr.bf16.mxu0 0
        %1110 = vmatmul.mubr.bf16.gmra.mrb[0].mxu0 %v1072
        %v1111 = vpop.f32.mrb[0].mxu0
        %v1112 = vadd.f32 0.0, %v1111
        %v1113 = vpop.f32.mrb[0].mxu0
        %v1114 = vpop.f32.mrb[0].mxu0
        %v1115 = vpop.f32.mrb[0].mxu0
        %1116 = vdwg.mxu0
        %v1117 = vpack.c.bf16 %v1112, %v1112
        %v1119 = vsel %vm690, %v1117, 0
        %v1122 = vsel %vm752, %v684, 0
        %1124 = vmatprep.subr.bf16.mxu0 0
        %1125 = vmatpush1.bf16.msra.mxu0 %v1122
        %1126 = vmatprep.subr.bf16.mxu0 0
        %1127 = vmatpush1.bf16.msra.mxu0 0
        %1128 = vmatprep.subr.bf16.mxu0 0
        %1129 = vmatpush1.bf16.msra.mxu0 0
        %1130 = vmatprep.subr.bf16.mxu0 0
        %1131 = vmatpush1.bf16.msra.mxu0 0
        %1132 = vmatprep.subr.bf16.mxu0 0
        %1133 = vmatpush1.bf16.msra.mxu0 0
        %1134 = vmatprep.subr.bf16.mxu0 0
        %1135 = vmatpush1.bf16.msra.mxu0 0
        %1136 = vmatprep.subr.bf16.mxu0 0
        %1137 = vmatpush1.bf16.msra.mxu0 0
        %1138 = vmatprep.subr.bf16.mxu0 0
        %1139 = vmatpush1.bf16.msra.mxu0 0
        %1140 = vmatprep.subr.bf16.mxu0 0
        %1141 = vmatpush1.bf16.msra.mxu0 0
        %1142 = vmatprep.subr.bf16.mxu0 0
        %1143 = vmatpush1.bf16.msra.mxu0 0
        %1144 = vmatprep.subr.bf16.mxu0 0
        %1145 = vmatpush1.bf16.msra.mxu0 0
        %1146 = vmatprep.subr.bf16.mxu0 0
        %1147 = vmatpush1.bf16.msra.mxu0 0
        %1148 = vmatprep.subr.bf16.mxu0 0
        %1149 = vmatpush1.bf16.msra.mxu0 0
        %1150 = vmatprep.subr.bf16.mxu0 0
        %1151 = vmatpush1.bf16.msra.mxu0 0
        %1152 = vmatprep.subr.bf16.mxu0 0
        %1153 = vmatpush1.bf16.msra.mxu0 0
        %1154 = vmatprep.subr.bf16.mxu0 0
        %1155 = vmatpush1.bf16.msra.mxu0 0
        %1156 = vmatprep.mubr.bf16.mxu0 0
        %1157 = vmatmul.mubr.bf16.gmra.mrb[0].mxu0 %v1119
        %v1158 = vpop.f32.mrb[0].mxu0
        %v1159 = vadd.f32 0.0, %v1158
        %v1160 = vpop.f32.mrb[0].mxu0
        %v1161 = vpop.f32.mrb[0].mxu0
        %v1162 = vpop.f32.mrb[0].mxu0
        %1163 = vdwg.mxu0
        %v1164 = vadd.f32 %v1002, %v1159
        %1165 = vrot.lane.b32.xlu0 %v679, 104
        %v1166 = vpop.permute.xlu0 %1165
        %1167 = vrot.lane.b32.xlu0 %v802, 104
        %v1168 = vpop.permute.xlu0 %1167
        %v1170 = vsel %vm690, %v1166, 0
        %v1173 = vsel %vm690, %v1168, 0
        %1175 = vmatprep.subr.bf16.mxu0 0
        %1176 = vmatpush1.bf16.xpose.msra.mxu0 %v1173
        %1177 = vmatprep.subr.bf16.mxu0 0
        %1178 = vmatpush1.bf16.xpose.msra.mxu0 0
        %1179 = vmatprep.subr.bf16.mxu0 0
        %1180 = vmatpush1.bf16.xpose.msra.mxu0 0
        %1181 = vmatprep.subr.bf16.mxu0 0
        %1182 = vmatpush1.bf16.xpose.msra.mxu0 0
        %1183 = vmatprep.subr.bf16.mxu0 0
        %1184 = vmatpush1.bf16.xpose.msra.mxu0 0
        %1185 = vmatprep.subr.bf16.mxu0 0
        %1186 = vmatpush1.bf16.xpose.msra.mxu0 0
        %1187 = vmatprep.subr.bf16.mxu0 0
        %1188 = vmatpush1.bf16.xpose.msra.mxu0 0
        %1189 = vmatprep.subr.bf16.mxu0 0
        %1190 = vmatpush1.bf16.xpose.msra.mxu0 0
        %1191 = vmatprep.subr.bf16.mxu0 0
        %1192 = vmatpush1.bf16.xpose.msra.mxu0 0
        %1193 = vmatprep.subr.bf16.mxu0 0
        %1194 = vmatpush1.bf16.xpose.msra.mxu0 0
        %1195 = vmatprep.subr.bf16.mxu0 0
        %1196 = vmatpush1.bf16.xpose.msra.mxu0 0
        %1197 = vmatprep.subr.bf16.mxu0 0
        %1198 = vmatpush1.bf16.xpose.msra.mxu0 0
        %1199 = vmatprep.subr.bf16.mxu0 0
        %1200 = vmatpush1.bf16.xpose.msra.mxu0 0
        %1201 = vmatprep.subr.bf16.mxu0 0
        %1202 = vmatpush1.bf16.xpose.msra.mxu0 0
        %1203 = vmatprep.subr.bf16.mxu0 0
        %1204 = vmatpush1.bf16.xpose.msra.mxu0 0
        %1205 = vmatprep.subr.bf16.mxu0 0
        %1206 = vmatpush1.bf16.xpose.msra.mxu0 0
        %1207 = vmatprep.mubr.bf16.mxu0 0
        %1208 = vmatmul.mubr.bf16.gmra.mrb[0].mxu0 %v1170
        %v1209 = vpop.f32.mrb[0].mxu0
        %v1210 = vadd.f32 %v689, %v1209
        %v1211 = vpop.f32.mrb[0].mxu0
        %v1212 = vpop.f32.mrb[0].mxu0
        %v1213 = vpop.f32.mrb[0].mxu0
        %1214 = vdwg.mxu0
        %v1215 = vsel %vm690, %v1210, -inf
        %1216 = vmax.xlane.f32.xlu0 %v1215
        %v1217 = vpop.xlane.xlu0 %1216
        %v1218 = vsub.f32 %v1210, %v1217
        %v1219 = vmul.f32 %v1218, 1.442695
        %v1220 = vpow.pop %v1219
        %v1221 = vsel %vm690, %v1220, 0.0
        %1222 = vadd.xlane.f32.xlu0 %v1221
        %v1223 = vpop.xlane.xlu0 %1222
        %v1224 = vrcp.pop %v1223
        %v1225 = vmul.f32 %v1220, %v1224
        %v1226 = vpack.c.bf16 %v1225, %v1225
        %1227 = vrot.lane.b32.xlu0 %v865, 104
        %v1228 = vpop.permute.xlu0 %1227
        %v1230 = vsel %vm690, %v1226, 0
        %v1233 = vsel %vm752, %v1228, 0
        %1235 = vmatprep.subr.bf16.mxu0 0
        %1236 = vmatpush1.bf16.msra.mxu0 %v1233
        %1237 = vmatprep.subr.bf16.mxu0 0
        %1238 = vmatpush1.bf16.msra.mxu0 0
        %1239 = vmatprep.subr.bf16.mxu0 0
        %1240 = vmatpush1.bf16.msra.mxu0 0
        %1241 = vmatprep.subr.bf16.mxu0 0
        %1242 = vmatpush1.bf16.msra.mxu0 0
        %1243 = vmatprep.subr.bf16.mxu0 0
        %1244 = vmatpush1.bf16.msra.mxu0 0
        %1245 = vmatprep.subr.bf16.mxu0 0
        %1246 = vmatpush1.bf16.msra.mxu0 0
        %1247 = vmatprep.subr.bf16.mxu0 0
        %1248 = vmatpush1.bf16.msra.mxu0 0
        %1249 = vmatprep.subr.bf16.mxu0 0
        %1250 = vmatpush1.bf16.msra.mxu0 0
        %1251 = vmatprep.subr.bf16.mxu0 0
        %1252 = vmatpush1.bf16.msra.mxu0 0
        %1253 = vmatprep.subr.bf16.mxu0 0
        %1254 = vmatpush1.bf16.msra.mxu0 0
        %1255 = vmatprep.subr.bf16.mxu0 0
        %1256 = vmatpush1.bf16.msra.mxu0 0
        %1257 = vmatprep.subr.bf16.mxu0 0
        %1258 = vmatpush1.bf16.msra.mxu0 0
        %1259 = vmatprep.subr.bf16.mxu0 0
        %1260 = vmatpush1.bf16.msra.mxu0 0
        %1261 = vmatprep.subr.bf16.mxu0 0
        %1262 = vmatpush1.bf16.msra.mxu0 0
        %1263 = vmatprep.subr.bf16.mxu0 0
        %1264 = vmatpush1.bf16.msra.mxu0 0
        %1265 = vmatprep.subr.bf16.mxu0 0
        %1266 = vmatpush1.bf16.msra.mxu0 0
        %1267 = vmatprep.mubr.bf16.mxu0 0
        %1268 = vmatmul.mubr.bf16.gmra.mrb[0].mxu0 %v1230
        %v1269 = vpop.f32.mrb[0].mxu0
        %v1270 = vadd.f32 0.0, %v1269
        %v1271 = vpop.f32.mrb[0].mxu0
        %v1272 = vpop.f32.mrb[0].mxu0
        %v1273 = vpop.f32.mrb[0].mxu0
        %1274 = vdwg.mxu0
        %v1275 = vpack.c.bf16 %v1270, %v1270
        %v1277 = vsel %vm690, %v1275, 0
        %v1280 = vsel %vm752, %v685, 0
        %1282 = vmatprep.subr.bf16.mxu0 0
        %1283 = vmatpush1.bf16.msra.mxu0 %v1280
        %1284 = vmatprep.subr.bf16.mxu0 0
        %1285 = vmatpush1.bf16.msra.mxu0 0
        %1286 = vmatprep.subr.bf16.mxu0 0
        %1287 = vmatpush1.bf16.msra.mxu0 0
        %1288 = vmatprep.subr.bf16.mxu0 0
        %1289 = vmatpush1.bf16.msra.mxu0 0
        %1290 = vmatprep.subr.bf16.mxu0 0
        %1291 = vmatpush1.bf16.msra.mxu0 0
        %1292 = vmatprep.subr.bf16.mxu0 0
        %1293 = vmatpush1.bf16.msra.mxu0 0
        %1294 = vmatprep.subr.bf16.mxu0 0
        %1295 = vmatpush1.bf16.msra.mxu0 0
        %1296 = vmatprep.subr.bf16.mxu0 0
        %1297 = vmatpush1.bf16.msra.mxu0 0
        %1298 = vmatprep.subr.bf16.mxu0 0
        %1299 = vmatpush1.bf16.msra.mxu0 0
        %1300 = vmatprep.subr.bf16.mxu0 0
        %1301 = vmatpush1.bf16.msra.mxu0 0
        %1302 = vmatprep.subr.bf16.mxu0 0
        %1303 = vmatpush1.bf16.msra.mxu0 0
        %1304 = vmatprep.subr.bf16.mxu0 0
        %1305 = vmatpush1.bf16.msra.mxu0 0
        %1306 = vmatprep.subr.bf16.mxu0 0
        %1307 = vmatpush1.bf16.msra.mxu0 0
        %1308 = vmatprep.subr.bf16.mxu0 0
        %1309 = vmatpush1.bf16.msra.mxu0 0
        %1310 = vmatprep.subr.bf16.mxu0 0
        %1311 = vmatpush1.bf16.msra.mxu0 0
        %1312 = vmatprep.subr.bf16.mxu0 0
        %1313 = vmatpush1.bf16.msra.mxu0 0
        %1314 = vmatprep.mubr.bf16.mxu0 0
        %1315 = vmatmul.mubr.bf16.gmra.mrb[0].mxu0 %v1277
        %v1316 = vpop.f32.mrb[0].mxu0
        %v1317 = vadd.f32 0.0, %v1316
        %v1318 = vpop.f32.mrb[0].mxu0
        %v1319 = vpop.f32.mrb[0].mxu0
        %v1320 = vpop.f32.mrb[0].mxu0
        %1321 = vdwg.mxu0
        %v1322 = vadd.f32 %v1164, %v1317
        %1323 = vst.msk [vmem:[%s486] sm:$0xff] %vm635, %v1322
        %s1324 = sand.u32 %s243, 1
        %s1325 = scalar_lea.sflag [#allocation6], %s1324
        %s1326 = sand.u32 %s243, 1
        %s1327 = smul.addr %s1326, 8
        %s1328 = scalar_lea.vmem [#allocation18], %s1327
        // Predicated region
        $region89: #{tpu_custom_call.1} parent=51 // pred_check
          %p1329 = pneg %p253
        $region90: #{tpu_custom_call.1} parent=51 // pred_check_branch
          %1331 = sbr.rel (%p1329) target = $region92
        $region91: #{tpu_custom_call.1} parent=51 // pred_region
          %s1333 = ssub.s32 128, 128
          %1334 = vsyncadd %s1325, %s1333
          %s1335 = sadd.s32 %s36, %s35
          %s1336 = smul.addr %s1335, 128
          %s1337 = scalar_lea.hbm %s8, %s1336
          %s1339 = sshll.u32 %s1328, 4
          %s1340 = int_to_ptr.vmem [resolvable:$true] %s1339
          %1342 = dma.vmem_to_hbm [thread:$0]  %s1340, 128, %s1337, %s1325
        $region92: #{tpu_custom_call.1} parent=51 // pred_fallthru
          _
      $region52: #{tpu_custom_call.1} parent=5 // pred_fallthru
        _
      %p1343 = scmp.le.s32.totalorder 2, %s26
      // Predicated region
      $region93: #{tpu_custom_call.1} parent=5 // pred_check
        %p1344 = pneg %p1343
      $region94: #{tpu_custom_call.1} parent=5 // pred_check_branch
        %1346 = sbr.rel (%p1344) target = $region96
      $region95: #{tpu_custom_call.1} parent=5 // pred_region
        %s1347 = ssub.s32 %s26, 2
        // Predicated region
        $region97: #{tpu_custom_call.1} parent=95 // pred_check
          %p1348 = pneg %p259
        $region98: #{tpu_custom_call.1} parent=95 // pred_check_branch
          %1350 = sbr.rel (%p1348) target = $region100
        $region99: #{tpu_custom_call.1} parent=95 // pred_region
          %s1351 = sand.u32 %s244, 1
          %s1352 = scalar_lea.sflag [#allocation6], %s1351
          %s1353 = sand.u32 %s244, 1
          %s1354 = smul.addr %s1353, 8
          %s1355 = scalar_lea.vmem [#allocation18], %s1354
          %1356 = dma.done %s1352, 128
        $region100: #{tpu_custom_call.1} parent=95 // pred_fallthru
          _
      $region96: #{tpu_custom_call.1} parent=5 // pred_fallthru
        _
    $region6: #{tpu_custom_call.1} parent=1 // loop_footer
      %s30 = sadd.s32 1, %s26
    $region7: #{tpu_custom_call.1} parent=1 // loop_footer_branch
      %25 = sbr.rel target = $region3
    $region8: #{tpu_custom_call.1} parent=1 // loop_exit
      _
    %1357 = vsyncpa [#allocation5], 1
    %s1358 = scalar_lea.sflag [#allocation5], 1
    %1359 = vsyncpa %s1358, 1
    %1360 = vsyncpa [#allocation8], 1
    %s1361 = scalar_lea.sflag [#allocation8], 1
    %1362 = vsyncpa %s1361, 1
    %1363 = vsyncpa [#allocation11], 1
    %s1364 = scalar_lea.sflag [#allocation11], 1
    %1365 = vsyncpa %s1364, 1
    %1366 = vsyncpa [#allocation14], 1
    %1367 = vsyncpa [#allocation17], 1
    %1368 = vsyncpa [#allocation6], 1
    %s1369 = scalar_lea.sflag [#allocation6], 1
    %1370 = vsyncpa %s1369, 1

</llo_original>
